<compile_context>
chip_gen: v6e
topology: v6e:2x2x1
jax: 0.10.0
libtpu: 0.0.40
codegen_flags: <defaults>
</compile_context>

<pallas_src>
import functools

import jax
import jax.numpy as jnp
from jax import lax
from jax.experimental import pallas as pl
from jax.experimental.pallas import tpu as pltpu

BN_EPS = 1e-5


# ----------------------------------------------------------------------------
# Pass 1: per-channel batch statistics (training-mode BatchNorm2d, biased var)
# ----------------------------------------------------------------------------
def _stats_kernel(x_ref, moments_ref, *, cin):
    """Accumulate per-channel sum and sum-of-squares across the batch grid.

    x_ref       : (1, C_total, H*W) block for image n (only rows :cin are live)
    moments_ref : (cin, 2) accumulator, resident across the grid ("arbitrary")
                  column 0 = sum(x), column 1 = sum(x*x)
    """
    x = x_ref[0, :cin, :].astype(jnp.float32)            # (cin, HW), lane-dense
    s = jnp.sum(x, axis=1, keepdims=True)                # (cin, 1)
    sq = jnp.sum(x * x, axis=1, keepdims=True)           # (cin, 1)  one-pass moments
    m = jnp.concatenate([s, sq], axis=1)                 # (cin, 2)

    @pl.when(pl.program_id(0) == 0)
    def _():
        moments_ref[...] = jnp.zeros_like(moments_ref)

    moments_ref[...] += m


def _layer_stats(x_buf, cin):
    n, c_total, hw = x_buf.shape
    kern = functools.partial(_stats_kernel, cin=cin)
    return pl.pallas_call(
        kern,
        grid=(n,),
        in_specs=[pl.BlockSpec((1, c_total, hw), lambda i: (i, 0, 0))],
        out_specs=pl.BlockSpec((cin, 2), lambda i: (0, 0)),
        out_shape=jax.ShapeDtypeStruct((cin, 2), jnp.float32),
        compiler_params=pltpu.CompilerParams(
            dimension_semantics=("arbitrary",)),
    )(x_buf)


# ----------------------------------------------------------------------------
# Pass 2: fused (folded) BatchNorm + ReLU + 3x3 conv (pad=1, stride=1, no bias)
# ----------------------------------------------------------------------------
def _conv_kernel(x_ref, scale_ref, shift_ref, wmask_ref, w_ref, o_ref, *,
                 cin, img_w):
    """One image per grid step, channels on sublanes, pixels on lanes.

    x_ref     : (1, C_total, HW)  activations (only rows :cin are live)
    scale_ref : (cin, 1)          gamma * rsqrt(var + eps)
    shift_ref : (cin, 1)          beta - mean * scale
    wmask_ref : (2, HW)           row 0: valid lanes for kw=0 (w >= 1)
                                  row 1: valid lanes for kw=2 (w <= W-2)
    w_ref     : (cout, 9*cin)     conv weights, columns ordered (kh, kw, cin)
    o_ref     : (1, cout, HW)     output image (lane-dense store)
    """
    hw = x_ref.shape[2]
    x = x_ref[0, :cin, :].astype(jnp.float32)                      # (cin, HW)
    # BN + ReLU as a single lane-dense scale/shift (gamma/beta/mean/var folded
    # in the wrapper).
    a = jnp.maximum(x * scale_ref[...] + shift_ref[...], 0.0)

    # Zero lane-pad so every (kh, kw) tap becomes a static lane shift.  Taps
    # that fall outside the image in H land in the zero pad; the W wrap-around
    # is removed with the column masks.  No VMEM scratch, no full memset.
    pad = img_w + 1
    zpad = jnp.zeros((a.shape[0], pad), jnp.float32)
    ap = jnp.concatenate([zpad, a, zpad], axis=1)                  # (cin, HW+2*pad)

    mask_l = wmask_ref[0:1, :]                                     # hoisted loads
    mask_r = wmask_ref[1:2, :]

    pieces = []
    for kh in range(3):
        for kw in range(3):
            d = (kh - 1) * img_w + (kw - 1)
            piece = ap[:, pad + d:pad + d + hw]                    # (cin, HW)
            if kw == 0:
                piece = piece * mask_l
            elif kw == 2:
                piece = piece * mask_r
            pieces.append(piece)
    cols = jnp.concatenate(pieces, axis=0)                         # (9*cin, HW) im2col

    # Single MXU contraction with K = 9*cin instead of nine K=cin dots.
    y = jnp.dot(w_ref[...], cols, preferred_element_type=jnp.float32)  # (cout, HW)
    o_ref[0] = y.astype(o_ref.dtype)


def _layer_conv(x_buf, scale, shift, wmask, w2, cin, img_w):
    n, c_total, hw = x_buf.shape
    cout = w2.shape[0]
    kern = functools.partial(_conv_kernel, cin=cin, img_w=img_w)
    flops = 2 * n * hw * 9 * cin * cout
    bytes_accessed = 4 * (n * c_total * hw + w2.size + n * cout * hw)
    return pl.pallas_call(
        kern,
        grid=(n,),
        in_specs=[
            pl.BlockSpec((1, c_total, hw), lambda i: (i, 0, 0)),
            pl.BlockSpec((cin, 1), lambda i: (0, 0)),
            pl.BlockSpec((cin, 1), lambda i: (0, 0)),
            pl.BlockSpec((2, hw), lambda i: (0, 0)),
            pl.BlockSpec((cout, 9 * cin), lambda i: (0, 0)),
        ],
        out_specs=pl.BlockSpec((1, cout, hw), lambda i: (i, 0, 0)),
        out_shape=jax.ShapeDtypeStruct((n, cout, hw), jnp.float32),
        compiler_params=pltpu.CompilerParams(
            dimension_semantics=("parallel",)),
        cost_estimate=pl.CostEstimate(
            flops=flops, transcendentals=0, bytes_accessed=bytes_accessed),
    )(x_buf, scale, shift, wmask, w2)


# ----------------------------------------------------------------------------
# DenseBlock forward
# ----------------------------------------------------------------------------
def init_dense_block_params(key, num_convs, in_channels, out_channels):
    """Parameters mirroring the module __init__ shapes (Conv2d weight OIHW)."""
    params = []
    for i in range(num_convs):
        cin = in_channels + i * out_channels
        key, wk, gk, bk = jax.random.split(key, 4)
        w = jax.random.normal(wk, (out_channels, cin, 3, 3), jnp.float32) * 0.1
        gamma = 1.0 + 0.1 * jax.random.normal(gk, (cin,), jnp.float32)
        beta = 0.1 * jax.random.normal(bk, (cin,), jnp.float32)
        params.append((gamma, beta, w))
    return params


@jax.jit
def dense_block_forward(x_nchw, params):
    """DenseBlock.forward: y = layer(x); x = cat([x, y], dim=1), per layer."""
    n, c0, h, iw = x_nchw.shape
    hw = h * iw
    cout = params[0][2].shape[0]
    c_total = c0 + len(params) * cout

    # Preallocated dense channel buffer: each layer writes its Cout slice in
    # place instead of re-copying the growing activation with jnp.concatenate.
    x_buf = jnp.concatenate(
        [x_nchw.reshape(n, c0, hw).astype(jnp.float32),
         jnp.zeros((n, c_total - c0, hw), jnp.float32)], axis=1)

    # Column-boundary masks for the kw=0 / kw=2 taps, computed once.
    col = jnp.arange(hw, dtype=jnp.int32) % iw
    wmask = jnp.stack([(col >= 1), (col <= iw - 2)]).astype(jnp.float32)

    count = float(n * hw)
    offset = c0
    for gamma, beta, wgt in params:
        cin = gamma.shape[0]

        # Pass 1: batch statistics (training-mode BN, biased variance).
        moments = _layer_stats(x_buf, cin)
        mean = moments[:, 0] / count
        var = moments[:, 1] / count - mean * mean
        scale = gamma * lax.rsqrt(var + BN_EPS)
        shift = beta - mean * scale

        # Conv weight (Cout, Cin, 3, 3) -> (Cout, 9*Cin), columns (kh, kw, ci).
        w2 = jnp.transpose(wgt, (0, 2, 3, 1)).reshape(cout, 9 * cin)

        # Pass 2: fused scale/shift + ReLU + 3x3 conv.
        y = _layer_conv(x_buf, scale.reshape(cin, 1), shift.reshape(cin, 1),
                        wmask, w2, cin, iw)
        x_buf = x_buf.at[:, offset:offset + cout, :].set(y)
        offset += cout

    return x_buf.reshape(n, c_total, h, iw)


# ----------------------------------------------------------------------------
# Pure-JAX reference replicating the PyTorch forward (NCHW).
# ----------------------------------------------------------------------------
def _reference_forward(x_nchw, params):
    x = x_nchw
    for gamma, beta, wgt in params:
        cin = x.shape[1]
        mean = jnp.mean(x, axis=(0, 2, 3), keepdims=True)
        var = jnp.mean((x - mean) ** 2, axis=(0, 2, 3), keepdims=True)
        g = gamma.reshape(1, cin, 1, 1)
        b = beta.reshape(1, cin, 1, 1)
        a = jnp.maximum((x - mean) * g * lax.rsqrt(var + BN_EPS) + b, 0.0)
        y = lax.conv_general_dilated(
            a, wgt, window_strides=(1, 1), padding=((1, 1), (1, 1)),
            dimension_numbers=("NCHW", "OIHW", "NCHW"))
        x = jnp.concatenate([x, y], axis=1)
    return x


if __name__ == "__main__":
    num_convs, in_channels, out_channels = 2, 4, 4
    N, H, W = 2, 16, 16

    key = jax.random.PRNGKey(0)
    key, xk = jax.random.split(key)
    x = jax.random.normal(xk, (N, in_channels, H, W), jnp.float32)
    params = init_dense_block_params(key, num_convs, in_channels, out_channels)

    out = jax.block_until_ready(dense_block_forward(x, params))

    expected_channels = in_channels + num_convs * out_channels
    assert out.shape == (N, expected_channels, H, W), out.shape

    ref = _reference_forward(x, params)
    err = float(jnp.max(jnp.abs(out - ref)))
    assert err < 1e-3, err

    print("KERNEL_OK")
</pallas_src>

<mosaic_0001>
module attributes {stable_mosaic.version = 11 : i64} {
  func.func @_stats_kernel(%arg0: i32, %arg1: memref<1x12x256xf32, #tpu.memory_space<vmem>>, %arg2: memref<4x2xf32, #tpu.memory_space<vmem>>) attributes {dimension_semantics = [#tpu.dimension_semantics<arbitrary>], iteration_bounds = array<i64: 2>, scalar_prefetch = 0 : i64, scratch_operands = 0 : i64, tpu.core_type = #tpu.core_type<tc>, window_params = [{transform_indices = @transform_0, window_bounds = array<i64: 1, 12, 256>}, {pipeline_mode = #tpu.pipeline_mode<synchronous>, transform_indices = @transform_1, window_bounds = array<i64: 4, 2>}]} {
    %c0 = arith.constant 0 : index
    %c0_0 = arith.constant 0 : index
    %c0_1 = arith.constant 0 : index
    %0 = vector.load %arg1[%c0, %c0_0, %c0_1] : memref<1x12x256xf32, #tpu.memory_space<vmem>>, vector<1x4x256xf32>
    %1 = vector.shape_cast %0 : vector<1x4x256xf32> to vector<4x256xf32>
    %cst = arith.constant dense<0.000000e+00> : vector<4xf32>
    %2 = vector.multi_reduction <add>, %1, %cst [1] : vector<4x256xf32> to vector<4xf32>
    %3 = vector.shape_cast %2 : vector<4xf32> to vector<4x1xf32>
    %4 = arith.mulf %1, %1 : vector<4x256xf32>
    %cst_2 = arith.constant dense<0.000000e+00> : vector<4xf32>
    %5 = vector.multi_reduction <add>, %4, %cst_2 [1] : vector<4x256xf32> to vector<4xf32>
    %6 = vector.shape_cast %5 : vector<4xf32> to vector<4x1xf32>
    %7 = tpu.concatenate %3, %6 in 1 : vector<4x1xf32>, vector<4x1xf32> -> vector<4x2xf32>
    %c0_i32 = arith.constant 0 : i32
    %8 = arith.cmpi eq, %arg0, %c0_i32 : i32
    %9 = arith.extui %8 : i1 to i32
    %c0_i32_3 = arith.constant 0 : i32
    %10 = arith.cmpi ne, %9, %c0_i32_3 : i32
    scf.if %10 {
      %cst_8 = arith.constant 0.000000e+00 : f32
      %14 = vector.broadcast %cst_8 : f32 to vector<4x2xf32>
      %c0_9 = arith.constant 0 : index
      %c0_10 = arith.constant 0 : index
      %15 = vector.load %arg2[%c0_9, %c0_10] : memref<4x2xf32, #tpu.memory_space<vmem>>, vector<4x2xf32>
      tpu.vector_store %arg2[%c0_9, %c0_10], %14 {strides = array<i32>} : memref<4x2xf32, #tpu.memory_space<vmem>>, vector<4x2xf32>,
    } else {
    }
    %c0_4 = arith.constant 0 : index
    %c0_5 = arith.constant 0 : index
    %11 = vector.load %arg2[%c0_4, %c0_5] : memref<4x2xf32, #tpu.memory_space<vmem>>, vector<4x2xf32>
    %12 = arith.addf %11, %7 : vector<4x2xf32>
    %c0_6 = arith.constant 0 : index
    %c0_7 = arith.constant 0 : index
    %13 = vector.load %arg2[%c0_6, %c0_7] : memref<4x2xf32, #tpu.memory_space<vmem>>, vector<4x2xf32>
    tpu.vector_store %arg2[%c0_6, %c0_7], %12 {strides = array<i32>} : memref<4x2xf32, #tpu.memory_space<vmem>>, vector<4x2xf32>,
    return
  }
  func.func @transform_0(%arg0: i32) -> (i32, i32, i32) {
    %c0_i32 = arith.constant 0 : i32
    %c0_i32_0 = arith.constant 0 : i32
    %c0_i32_1 = arith.constant 0 : i32
    return %arg0, %c0_i32, %c0_i32_0 : i32, i32, i32
  }
  func.func @transform_1(%arg0: i32) -> (i32, i32) {
    %c0_i32 = arith.constant 0 : i32
    %c0_i32_0 = arith.constant 0 : i32
    %c0_i32_1 = arith.constant 0 : i32
    return %c0_i32, %c0_i32_0 : i32, i32
  }
}

module attributes {stable_mosaic.version = 11 : i64} {
  func.func @_stats_kernel(%arg0: i32, %arg1: memref<1x12x256xf32, #tpu.memory_space<vmem>>, %arg2: memref<8x2xf32, #tpu.memory_space<vmem>>) attributes {dimension_semantics = [#tpu.dimension_semantics<arbitrary>], iteration_bounds = array<i64: 2>, scalar_prefetch = 0 : i64, scratch_operands = 0 : i64, tpu.core_type = #tpu.core_type<tc>, window_params = [{transform_indices = @transform_0, window_bounds = array<i64: 1, 12, 256>}, {pipeline_mode = #tpu.pipeline_mode<synchronous>, transform_indices = @transform_1, window_bounds = array<i64: 8, 2>}]} {
    %c0 = arith.constant 0 : index
    %c0_0 = arith.constant 0 : index
    %c0_1 = arith.constant 0 : index
    %0 = vector.load %arg1[%c0, %c0_0, %c0_1] : memref<1x12x256xf32, #tpu.memory_space<vmem>>, vector<1x8x256xf32>
    %1 = vector.shape_cast %0 : vector<1x8x256xf32> to vector<8x256xf32>
    %cst = arith.constant dense<0.000000e+00> : vector<8xf32>
    %2 = vector.multi_reduction <add>, %1, %cst [1] : vector<8x256xf32> to vector<8xf32>
    %3 = vector.shape_cast %2 : vector<8xf32> to vector<8x1xf32>
    %4 = arith.mulf %1, %1 : vector<8x256xf32>
    %cst_2 = arith.constant dense<0.000000e+00> : vector<8xf32>
    %5 = vector.multi_reduction <add>, %4, %cst_2 [1] : vector<8x256xf32> to vector<8xf32>
    %6 = vector.shape_cast %5 : vector<8xf32> to vector<8x1xf32>
    %7 = tpu.concatenate %3, %6 in 1 : vector<8x1xf32>, vector<8x1xf32> -> vector<8x2xf32>
    %c0_i32 = arith.constant 0 : i32
    %8 = arith.cmpi eq, %arg0, %c0_i32 : i32
    %9 = arith.extui %8 : i1 to i32
    %c0_i32_3 = arith.constant 0 : i32
    %10 = arith.cmpi ne, %9, %c0_i32_3 : i32
    scf.if %10 {
      %cst_8 = arith.constant 0.000000e+00 : f32
      %14 = vector.broadcast %cst_8 : f32 to vector<8x2xf32>
      %c0_9 = arith.constant 0 : index
      %c0_10 = arith.constant 0 : index
      %15 = vector.load %arg2[%c0_9, %c0_10] : memref<8x2xf32, #tpu.memory_space<vmem>>, vector<8x2xf32>
      tpu.vector_store %arg2[%c0_9, %c0_10], %14 {strides = array<i32>} : memref<8x2xf32, #tpu.memory_space<vmem>>, vector<8x2xf32>,
    } else {
    }
    %c0_4 = arith.constant 0 : index
    %c0_5 = arith.constant 0 : index
    %11 = vector.load %arg2[%c0_4, %c0_5] : memref<8x2xf32, #tpu.memory_space<vmem>>, vector<8x2xf32>
    %12 = arith.addf %11, %7 : vector<8x2xf32>
    %c0_6 = arith.constant 0 : index
    %c0_7 = arith.constant 0 : index
    %13 = vector.load %arg2[%c0_6, %c0_7] : memref<8x2xf32, #tpu.memory_space<vmem>>, vector<8x2xf32>
    tpu.vector_store %arg2[%c0_6, %c0_7], %12 {strides = array<i32>} : memref<8x2xf32, #tpu.memory_space<vmem>>, vector<8x2xf32>,
    return
  }
  func.func @transform_0(%arg0: i32) -> (i32, i32, i32) {
    %c0_i32 = arith.constant 0 : i32
    %c0_i32_0 = arith.constant 0 : i32
    %c0_i32_1 = arith.constant 0 : i32
    return %arg0, %c0_i32, %c0_i32_0 : i32, i32, i32
  }
  func.func @transform_1(%arg0: i32) -> (i32, i32) {
    %c0_i32 = arith.constant 0 : i32
    %c0_i32_0 = arith.constant 0 : i32
    %c0_i32_1 = arith.constant 0 : i32
    return %c0_i32, %c0_i32_0 : i32, i32
  }
}

module attributes {stable_mosaic.version = 11 : i64} {
  func.func @_conv_kernel(%arg0: i32, %arg1: memref<1x12x256xf32, #tpu.memory_space<vmem>>, %arg2: memref<4x1xf32, #tpu.memory_space<vmem>>, %arg3: memref<4x1xf32, #tpu.memory_space<vmem>>, %arg4: memref<2x256xf32, #tpu.memory_space<vmem>>, %arg5: memref<4x36xf32, #tpu.memory_space<vmem>>, %arg6: memref<1x4x256xf32, #tpu.memory_space<vmem>>) attributes {dimension_semantics = [#tpu.dimension_semantics<parallel>], iteration_bounds = array<i64: 2>, scalar_prefetch = 0 : i64, scratch_operands = 0 : i64, tpu.core_type = #tpu.core_type<tc>, window_params = [{transform_indices = @transform_0, window_bounds = array<i64: 1, 12, 256>}, {pipeline_mode = #tpu.pipeline_mode<synchronous>, transform_indices = @transform_1, window_bounds = array<i64: 4, 1>}, {pipeline_mode = #tpu.pipeline_mode<synchronous>, transform_indices = @transform_2, window_bounds = array<i64: 4, 1>}, {pipeline_mode = #tpu.pipeline_mode<synchronous>, transform_indices = @transform_3, window_bounds = array<i64: 2, 256>}, {pipeline_mode = #tpu.pipeline_mode<synchronous>, transform_indices = @transform_4, window_bounds = array<i64: 4, 36>}, {transform_indices = @transform_5, window_bounds = array<i64: 1, 4, 256>}]} {
    %c0 = arith.constant 0 : index
    %c0_0 = arith.constant 0 : index
    %c0_1 = arith.constant 0 : index
    %0 = vector.load %arg1[%c0, %c0_0, %c0_1] : memref<1x12x256xf32, #tpu.memory_space<vmem>>, vector<1x4x256xf32>
    %1 = vector.shape_cast %0 : vector<1x4x256xf32> to vector<4x256xf32>
    %c0_2 = arith.constant 0 : index
    %c0_3 = arith.constant 0 : index
    %2 = vector.load %arg2[%c0_2, %c0_3] : memref<4x1xf32, #tpu.memory_space<vmem>>, vector<4x1xf32>
    %3 = vector.broadcast %2 : vector<4x1xf32> to vector<4x256xf32>
    %4 = arith.mulf %1, %3 : vector<4x256xf32>
    %c0_4 = arith.constant 0 : index
    %c0_5 = arith.constant 0 : index
    %5 = vector.load %arg3[%c0_4, %c0_5] : memref<4x1xf32, #tpu.memory_space<vmem>>, vector<4x1xf32>
    %6 = vector.broadcast %5 : vector<4x1xf32> to vector<4x256xf32>
    %7 = arith.addf %4, %6 : vector<4x256xf32>
    %cst = arith.constant 0.000000e+00 : f32
    %8 = vector.broadcast %cst : f32 to vector<4x256xf32>
    %9 = arith.maximumf %7, %8 : vector<4x256xf32>
    %cst_6 = arith.constant 0.000000e+00 : f32
    %10 = vector.broadcast %cst_6 : f32 to vector<4x17xf32>
    %11 = tpu.concatenate %10, %9, %10 in 1 : vector<4x17xf32>, vector<4x256xf32>, vector<4x17xf32> -> vector<4x290xf32>
    %c0_7 = arith.constant 0 : index
    %c0_8 = arith.constant 0 : index
    %12 = vector.load %arg4[%c0_7, %c0_8] : memref<2x256xf32, #tpu.memory_space<vmem>>, vector<1x256xf32>
    %c1 = arith.constant 1 : index
    %c0_9 = arith.constant 0 : index
    %13 = vector.load %arg4[%c1, %c0_9] : memref<2x256xf32, #tpu.memory_space<vmem>>, vector<1x256xf32>
    %14 = vector.extract_strided_slice %11 {offsets = [0, 0], sizes = [4, 256], strides = [1, 1]} : vector<4x290xf32> to vector<4x256xf32>
    %15 = vector.broadcast %12 : vector<1x256xf32> to vector<4x256xf32>
    %16 = arith.mulf %14, %15 : vector<4x256xf32>
    %17 = vector.extract_strided_slice %11 {offsets = [0, 1], sizes = [4, 256], strides = [1, 1]} : vector<4x290xf32> to vector<4x256xf32>
    %18 = vector.extract_strided_slice %11 {offsets = [0, 2], sizes = [4, 256], strides = [1, 1]} : vector<4x290xf32> to vector<4x256xf32>
    %19 = vector.broadcast %13 : vector<1x256xf32> to vector<4x256xf32>
    %20 = arith.mulf %18, %19 : vector<4x256xf32>
    %21 = vector.extract_strided_slice %11 {offsets = [0, 16], sizes = [4, 256], strides = [1, 1]} : vector<4x290xf32> to vector<4x256xf32>
    %22 = vector.broadcast %12 : vector<1x256xf32> to vector<4x256xf32>
    %23 = arith.mulf %21, %22 : vector<4x256xf32>
    %24 = vector.extract_strided_slice %11 {offsets = [0, 17], sizes = [4, 256], strides = [1, 1]} : vector<4x290xf32> to vector<4x256xf32>
    %25 = vector.extract_strided_slice %11 {offsets = [0, 18], sizes = [4, 256], strides = [1, 1]} : vector<4x290xf32> to vector<4x256xf32>
    %26 = vector.broadcast %13 : vector<1x256xf32> to vector<4x256xf32>
    %27 = arith.mulf %25, %26 : vector<4x256xf32>
    %28 = vector.extract_strided_slice %11 {offsets = [0, 32], sizes = [4, 256], strides = [1, 1]} : vector<4x290xf32> to vector<4x256xf32>
    %29 = vector.broadcast %12 : vector<1x256xf32> to vector<4x256xf32>
    %30 = arith.mulf %28, %29 : vector<4x256xf32>
    %31 = vector.extract_strided_slice %11 {offsets = [0, 33], sizes = [4, 256], strides = [1, 1]} : vector<4x290xf32> to vector<4x256xf32>
    %32 = vector.extract_strided_slice %11 {offsets = [0, 34], sizes = [4, 256], strides = [1, 1]} : vector<4x290xf32> to vector<4x256xf32>
    %33 = vector.broadcast %13 : vector<1x256xf32> to vector<4x256xf32>
    %34 = arith.mulf %32, %33 : vector<4x256xf32>
    %35 = tpu.concatenate %16, %17, %20, %23, %24, %27, %30, %31, %34 in 0 : vector<4x256xf32>, vector<4x256xf32>, vector<4x256xf32>, vector<4x256xf32>, vector<4x256xf32>, vector<4x256xf32>, vector<4x256xf32>, vector<4x256xf32>, vector<4x256xf32> -> vector<36x256xf32>
    %c0_10 = arith.constant 0 : index
    %c0_11 = arith.constant 0 : index
    %36 = vector.load %arg5[%c0_10, %c0_11] : memref<4x36xf32, #tpu.memory_space<vmem>>, vector<4x36xf32>
    %cst_12 = arith.constant dense<0.000000e+00> : vector<4x256xf32>
    %37 = tpu.matmul %36, %35, %cst_12 {dimension_numbers = #tpu.dot_dimension_numbers<[1], [0], [0], [1], [0, 0, 1, 1], [], []>} : vector<4x36xf32>, vector<36x256xf32>, vector<4x256xf32> -> vector<4x256xf32>
    %c0_13 = arith.constant 0 : index
    %c0_14 = arith.constant 0 : index
    %c0_15 = arith.constant 0 : index
    %38 = vector.load %arg6[%c0_13, %c0_14, %c0_15] : memref<1x4x256xf32, #tpu.memory_space<vmem>>, vector<1x4x256xf32>
    %39 = vector.shape_cast %38 : vector<1x4x256xf32> to vector<4x256xf32>
    %40 = vector.shape_cast %37 : vector<4x256xf32> to vector<1x4x256xf32>
    tpu.vector_store %arg6[%c0_13, %c0_14, %c0_15], %40 {strides = array<i32>} : memref<1x4x256xf32, #tpu.memory_space<vmem>>, vector<1x4x256xf32>,
    return
  }
  func.func @transform_0(%arg0: i32) -> (i32, i32, i32) {
    %c0_i32 = arith.constant 0 : i32
    %c0_i32_0 = arith.constant 0 : i32
    %c0_i32_1 = arith.constant 0 : i32
    return %arg0, %c0_i32, %c0_i32_0 : i32, i32, i32
  }
  func.func @transform_1(%arg0: i32) -> (i32, i32) {
    %c0_i32 = arith.constant 0 : i32
    %c0_i32_0 = arith.constant 0 : i32
    %c0_i32_1 = arith.constant 0 : i32
    return %c0_i32, %c0_i32_0 : i32, i32
  }
  func.func @transform_2(%arg0: i32) -> (i32, i32) {
    %c0_i32 = arith.constant 0 : i32
    %c0_i32_0 = arith.constant 0 : i32
    %c0_i32_1 = arith.constant 0 : i32
    return %c0_i32, %c0_i32_0 : i32, i32
  }
  func.func @transform_3(%arg0: i32) -> (i32, i32) {
    %c0_i32 = arith.constant 0 : i32
    %c0_i32_0 = arith.constant 0 : i32
    %c0_i32_1 = arith.constant 0 : i32
    return %c0_i32, %c0_i32_0 : i32, i32
  }
  func.func @transform_4(%arg0: i32) -> (i32, i32) {
    %c0_i32 = arith.constant 0 : i32
    %c0_i32_0 = arith.constant 0 : i32
    %c0_i32_1 = arith.constant 0 : i32
    return %c0_i32, %c0_i32_0 : i32, i32
  }
  func.func @transform_5(%arg0: i32) -> (i32, i32, i32) {
    %c0_i32 = arith.constant 0 : i32
    %c0_i32_0 = arith.constant 0 : i32
    %c0_i32_1 = arith.constant 0 : i32
    return %arg0, %c0_i32, %c0_i32_0 : i32, i32, i32
  }
}

module attributes {stable_mosaic.version = 11 : i64} {
  func.func @_conv_kernel(%arg0: i32, %arg1: memref<1x12x256xf32, #tpu.memory_space<vmem>>, %arg2: memref<8x1xf32, #tpu.memory_space<vmem>>, %arg3: memref<8x1xf32, #tpu.memory_space<vmem>>, %arg4: memref<2x256xf32, #tpu.memory_space<vmem>>, %arg5: memref<4x72xf32, #tpu.memory_space<vmem>>, %arg6: memref<1x4x256xf32, #tpu.memory_space<vmem>>) attributes {dimension_semantics = [#tpu.dimension_semantics<parallel>], iteration_bounds = array<i64: 2>, scalar_prefetch = 0 : i64, scratch_operands = 0 : i64, tpu.core_type = #tpu.core_type<tc>, window_params = [{transform_indices = @transform_0, window_bounds = array<i64: 1, 12, 256>}, {pipeline_mode = #tpu.pipeline_mode<synchronous>, transform_indices = @transform_1, window_bounds = array<i64: 8, 1>}, {pipeline_mode = #tpu.pipeline_mode<synchronous>, transform_indices = @transform_2, window_bounds = array<i64: 8, 1>}, {pipeline_mode = #tpu.pipeline_mode<synchronous>, transform_indices = @transform_3, window_bounds = array<i64: 2, 256>}, {pipeline_mode = #tpu.pipeline_mode<synchronous>, transform_indices = @transform_4, window_bounds = array<i64: 4, 72>}, {transform_indices = @transform_5, window_bounds = array<i64: 1, 4, 256>}]} {
    %c0 = arith.constant 0 : index
    %c0_0 = arith.constant 0 : index
    %c0_1 = arith.constant 0 : index
    %0 = vector.load %arg1[%c0, %c0_0, %c0_1] : memref<1x12x256xf32, #tpu.memory_space<vmem>>, vector<1x8x256xf32>
    %1 = vector.shape_cast %0 : vector<1x8x256xf32> to vector<8x256xf32>
    %c0_2 = arith.constant 0 : index
    %c0_3 = arith.constant 0 : index
    %2 = vector.load %arg2[%c0_2, %c0_3] : memref<8x1xf32, #tpu.memory_space<vmem>>, vector<8x1xf32>
    %3 = vector.broadcast %2 : vector<8x1xf32> to vector<8x256xf32>
    %4 = arith.mulf %1, %3 : vector<8x256xf32>
    %c0_4 = arith.constant 0 : index
    %c0_5 = arith.constant 0 : index
    %5 = vector.load %arg3[%c0_4, %c0_5] : memref<8x1xf32, #tpu.memory_space<vmem>>, vector<8x1xf32>
    %6 = vector.broadcast %5 : vector<8x1xf32> to vector<8x256xf32>
    %7 = arith.addf %4, %6 : vector<8x256xf32>
    %cst = arith.constant 0.000000e+00 : f32
    %8 = vector.broadcast %cst : f32 to vector<8x256xf32>
    %9 = arith.maximumf %7, %8 : vector<8x256xf32>
    %cst_6 = arith.constant 0.000000e+00 : f32
    %10 = vector.broadcast %cst_6 : f32 to vector<8x17xf32>
    %11 = tpu.concatenate %10, %9, %10 in 1 : vector<8x17xf32>, vector<8x256xf32>, vector<8x17xf32> -> vector<8x290xf32>
    %c0_7 = arith.constant 0 : index
    %c0_8 = arith.constant 0 : index
    %12 = vector.load %arg4[%c0_7, %c0_8] : memref<2x256xf32, #tpu.memory_space<vmem>>, vector<1x256xf32>
    %c1 = arith.constant 1 : index
    %c0_9 = arith.constant 0 : index
    %13 = vector.load %arg4[%c1, %c0_9] : memref<2x256xf32, #tpu.memory_space<vmem>>, vector<1x256xf32>
    %14 = vector.extract_strided_slice %11 {offsets = [0, 0], sizes = [8, 256], strides = [1, 1]} : vector<8x290xf32> to vector<8x256xf32>
    %15 = vector.broadcast %12 : vector<1x256xf32> to vector<8x256xf32>
    %16 = arith.mulf %14, %15 : vector<8x256xf32>
    %17 = vector.extract_strided_slice %11 {offsets = [0, 1], sizes = [8, 256], strides = [1, 1]} : vector<8x290xf32> to vector<8x256xf32>
    %18 = vector.extract_strided_slice %11 {offsets = [0, 2], sizes = [8, 256], strides = [1, 1]} : vector<8x290xf32> to vector<8x256xf32>
    %19 = vector.broadcast %13 : vector<1x256xf32> to vector<8x256xf32>
    %20 = arith.mulf %18, %19 : vector<8x256xf32>
    %21 = vector.extract_strided_slice %11 {offsets = [0, 16], sizes = [8, 256], strides = [1, 1]} : vector<8x290xf32> to vector<8x256xf32>
    %22 = vector.broadcast %12 : vector<1x256xf32> to vector<8x256xf32>
    %23 = arith.mulf %21, %22 : vector<8x256xf32>
    %24 = vector.extract_strided_slice %11 {offsets = [0, 17], sizes = [8, 256], strides = [1, 1]} : vector<8x290xf32> to vector<8x256xf32>
    %25 = vector.extract_strided_slice %11 {offsets = [0, 18], sizes = [8, 256], strides = [1, 1]} : vector<8x290xf32> to vector<8x256xf32>
    %26 = vector.broadcast %13 : vector<1x256xf32> to vector<8x256xf32>
    %27 = arith.mulf %25, %26 : vector<8x256xf32>
    %28 = vector.extract_strided_slice %11 {offsets = [0, 32], sizes = [8, 256], strides = [1, 1]} : vector<8x290xf32> to vector<8x256xf32>
    %29 = vector.broadcast %12 : vector<1x256xf32> to vector<8x256xf32>
    %30 = arith.mulf %28, %29 : vector<8x256xf32>
    %31 = vector.extract_strided_slice %11 {offsets = [0, 33], sizes = [8, 256], strides = [1, 1]} : vector<8x290xf32> to vector<8x256xf32>
    %32 = vector.extract_strided_slice %11 {offsets = [0, 34], sizes = [8, 256], strides = [1, 1]} : vector<8x290xf32> to vector<8x256xf32>
    %33 = vector.broadcast %13 : vector<1x256xf32> to vector<8x256xf32>
    %34 = arith.mulf %32, %33 : vector<8x256xf32>
    %35 = tpu.concatenate %16, %17, %20, %23, %24, %27, %30, %31, %34 in 0 : vector<8x256xf32>, vector<8x256xf32>, vector<8x256xf32>, vector<8x256xf32>, vector<8x256xf32>, vector<8x256xf32>, vector<8x256xf32>, vector<8x256xf32>, vector<8x256xf32> -> vector<72x256xf32>
    %c0_10 = arith.constant 0 : index
    %c0_11 = arith.constant 0 : index
    %36 = vector.load %arg5[%c0_10, %c0_11] : memref<4x72xf32, #tpu.memory_space<vmem>>, vector<4x72xf32>
    %cst_12 = arith.constant dense<0.000000e+00> : vector<4x256xf32>
    %37 = tpu.matmul %36, %35, %cst_12 {dimension_numbers = #tpu.dot_dimension_numbers<[1], [0], [0], [1], [0, 0, 1, 1], [], []>} : vector<4x72xf32>, vector<72x256xf32>, vector<4x256xf32> -> vector<4x256xf32>
    %c0_13 = arith.constant 0 : index
    %c0_14 = arith.constant 0 : index
    %c0_15 = arith.constant 0 : index
    %38 = vector.load %arg6[%c0_13, %c0_14, %c0_15] : memref<1x4x256xf32, #tpu.memory_space<vmem>>, vector<1x4x256xf32>
    %39 = vector.shape_cast %38 : vector<1x4x256xf32> to vector<4x256xf32>
    %40 = vector.shape_cast %37 : vector<4x256xf32> to vector<1x4x256xf32>
    tpu.vector_store %arg6[%c0_13, %c0_14, %c0_15], %40 {strides = array<i32>} : memref<1x4x256xf32, #tpu.memory_space<vmem>>, vector<1x4x256xf32>,
    return
  }
  func.func @transform_0(%arg0: i32) -> (i32, i32, i32) {
    %c0_i32 = arith.constant 0 : i32
    %c0_i32_0 = arith.constant 0 : i32
    %c0_i32_1 = arith.constant 0 : i32
    return %arg0, %c0_i32, %c0_i32_0 : i32, i32, i32
  }
  func.func @transform_1(%arg0: i32) -> (i32, i32) {
    %c0_i32 = arith.constant 0 : i32
    %c0_i32_0 = arith.constant 0 : i32
    %c0_i32_1 = arith.constant 0 : i32
    return %c0_i32, %c0_i32_0 : i32, i32
  }
  func.func @transform_2(%arg0: i32) -> (i32, i32) {
    %c0_i32 = arith.constant 0 : i32
    %c0_i32_0 = arith.constant 0 : i32
    %c0_i32_1 = arith.constant 0 : i32
    return %c0_i32, %c0_i32_0 : i32, i32
  }
  func.func @transform_3(%arg0: i32) -> (i32, i32) {
    %c0_i32 = arith.constant 0 : i32
    %c0_i32_0 = arith.constant 0 : i32
    %c0_i32_1 = arith.constant 0 : i32
    return %c0_i32, %c0_i32_0 : i32, i32
  }
  func.func @transform_4(%arg0: i32) -> (i32, i32) {
    %c0_i32 = arith.constant 0 : i32
    %c0_i32_0 = arith.constant 0 : i32
    %c0_i32_1 = arith.constant 0 : i32
    return %c0_i32, %c0_i32_0 : i32, i32
  }
  func.func @transform_5(%arg0: i32) -> (i32, i32, i32) {
    %c0_i32 = arith.constant 0 : i32
    %c0_i32_0 = arith.constant 0 : i32
    %c0_i32_1 = arith.constant 0 : i32
    return %arg0, %c0_i32, %c0_i32_0 : i32, i32, i32
  }
}

</mosaic_0001>

<llo_original>
// kernel: dense_block_forward.6
$region0: #{dense_block_forward.6}
  #allocation0 [shape = 'u32[]', space=smem, size = 0x4, offset = 0x4, fixed_abs, tag = 'smem constant byte address 0x4 - core index']
  #allocation1 [shape = 'u32[144,128]{1,0:T(1,128)}', space=vmem, size = 0x12000, scoped, tag = 'internal scratch']
  %s0 = inlined_call_operand.vmem [shape: f32[2,12,256], index: 0, kind: input, shape index: {}]
  %s1 = inlined_call_operand.vmem [shape: f32[8,2], index: 1, kind: output, shape index: {}]
  %s2 = sld [smem:[#allocation0]]
  $region41: #{dense_block_forward.6} parent=0
    _
  %s4 = ssub.s32 1, %s2
  %s5 = scalar_select 0, %s4, %s2
  loop: start=0, step=1, limit=4
  $region2: #{dense_block_forward.6} parent=0 // loop_pre_header
    _
  $region3: #{dense_block_forward.6} parent=0 // loop_header
    %s7 = sphi 0, %s11
    %p8 = scmp.ge.s32.totalorder %s7, 4
    %s17 = sphi 0, %s19
    %s20 = sphi 0, %s17
    %s21 = sphi 0, %s20
    %s37 = sphi 0, %s21
    %s41 = sphi 0, %s41
    %s43 = sphi 0, %s41
    %s44 = sphi 0, %s43
    %s58 = sphi 0, %s44
  $region4: #{dense_block_forward.6} parent=0 // loop_header_branch
    %10 = sbr.rel (%p8) target = $region8
  $region5: #{dense_block_forward.6} parent=0 // loop_body
    %s12 = ssub.s32 %s7, 1
    %s13 = ssub.s32 %s7, 2
    %s14 = sadd.s32 %s7, 1
    %s15 = ssub.s32 %s7, %s14
    %p16 = scmp.eq.s32.totalorder %s15, 0
    %s18 = sadd.s32 %s17, 1
    %s19 = scalar_select %p16, %s17, %s18
    %p22 = pneg %p16
    %p23 = scmp.eq.s32.totalorder %s7, 1
    %p24 = por %p22, %p23
    %p25 = scmp.ne.s32.totalorder %s17, %s20
    %p26 = scmp.eq.s32.totalorder %s7, 0
    %p27 = por %p25, %p26
    %p28 = scmp.ne.s32.totalorder %s17, %s20
    %p29 = scmp.eq.s32.totalorder %s12, 1
    %p30 = por %p28, %p29
    %p31 = scmp.ne.s32.totalorder %s20, %s21
    %p32 = scmp.eq.s32.totalorder %s12, 0
    %p33 = por %p31, %p32
    %p34 = scmp.ne.s32.totalorder %s20, %s21
    %p35 = scmp.eq.s32.totalorder %s13, 1
    %p36 = por %p34, %p35
    %p38 = scmp.ne.s32.totalorder %s21, %s37
    %p39 = scmp.eq.s32.totalorder %s13, 0
    %p40 = por %p38, %p39
    %s42 = sadd.s32 %s41, 1
    %p45 = scmp.eq.s32.totalorder %s7, 1
    %p46 = scmp.ne.s32.totalorder %s41, %s43
    %p47 = scmp.eq.s32.totalorder %s7, 0
    %p48 = por %p46, %p47
    %p49 = scmp.ne.s32.totalorder %s41, %s43
    %p50 = scmp.eq.s32.totalorder %s12, 1
    %p51 = por %p49, %p50
    %p52 = scmp.ne.s32.totalorder %s43, %s44
    %p53 = scmp.eq.s32.totalorder %s12, 0
    %p54 = por %p52, %p53
    %p55 = scmp.ne.s32.totalorder %s43, %s44
    %p56 = scmp.eq.s32.totalorder %s13, 1
    %p57 = por %p55, %p56
    %p59 = scmp.ne.s32.totalorder %s44, %s58
    %p60 = scmp.eq.s32.totalorder %s13, 0
    %p61 = por %p59, %p60
    %p62 = scmp.le.s32.totalorder 1, %s7
    %p63 = scmp.lt.s32.totalorder %s7, 3
    %p64 = pnand %p62, %p63
    %p65 = pneg %p64
    // Predicated region
    $region9: #{dense_block_forward.6} parent=5 // pred_check
      _
    $region10: #{dense_block_forward.6} parent=5 // pred_check_branch
      %67 = sbr.rel (%p64) target = $region12
    $region11: #{dense_block_forward.6} parent=5 // pred_region
      %s68 = ssub.s32 %s7, 1
    $region12: #{dense_block_forward.6} parent=5 // pred_fallthru
      _
    %p69 = scmp.lt.s32.totalorder %s7, 2
    // Predicated region
    $region13: #{dense_block_forward.6} parent=5 // pred_check
      %p70 = pneg %p69
    $region14: #{dense_block_forward.6} parent=5 // pred_check_branch
      %72 = sbr.rel (%p70) target = $region16
    $region15: #{dense_block_forward.6} parent=5 // pred_region
      // Predicated region
      $region17: #{dense_block_forward.6} parent=15 // pred_check
        %p73 = pneg %p27
      $region18: #{dense_block_forward.6} parent=15 // pred_check_branch
        %75 = sbr.rel (%p73) target = $region20
      $region19: #{dense_block_forward.6} parent=15 // pred_region
        %p76 = scmp.lt.s32.totalorder %s7, 1
        %s77 = scalar_select %p76, %s7, 1
        %s78 = smul.addr %s77, 4
        %s79 = smul.addr %s78, 8
        %s80 = scalar_lea.vmem %s0, %s79
      $region20: #{dense_block_forward.6} parent=15 // pred_fallthru
        _
    $region16: #{dense_block_forward.6} parent=5 // pred_fallthru
      _
    %p81 = scmp.le.s32.totalorder 1, %s7
    %p82 = scmp.lt.s32.totalorder %s7, 3
    %p83 = pnand %p81, %p82
    %p84 = pneg %p83
    // Predicated region
    $region21: #{dense_block_forward.6} parent=5 // pred_check
      _
    $region22: #{dense_block_forward.6} parent=5 // pred_check_branch
      %86 = sbr.rel (%p83) target = $region24
    $region23: #{dense_block_forward.6} parent=5 // pred_region
      %s87 = ssub.s32 %s7, 1
      %p88 = scmp.lt.s32.totalorder %s12, 1
      %s89 = scalar_select %p88, %s12, 1
      %s90 = smul.addr %s89, 4
      %s91 = smul.addr %s90, 8
      %s92 = scalar_lea.vmem %s0, %s91
      %p93 = pneg %p33
      %p94 = pneg %p30
      %p95 = pneg %p54
      %p96 = pneg %p51
      %p97 = scmp.lt.s32.totalorder %s12, 1
      %s98 = scalar_select %p97, %s12, 1
      %s99 = smul.addr %s98, 4
      %s100 = smul.addr %s99, 8
      %s101 = scalar_lea.vmem %s0, %s100
      %v102 = vld [vmem:[%s101] sm:$0xff]
      %v103 = vld [vmem:[%s101 + $0x8] sm:$0xff]
      %v104 = vadd.f32 %v102, %v103
      %105 = vadd.xlane.f32.xlu0 %v104
      %v106 = vpop.xlane.xlu0 %105
      %v107 = vmul.f32 %v102, %v102
      %v108 = vmul.f32 %v103, %v103
      %v109 = vadd.f32 %v107, %v108
      %110 = vadd.xlane.f32.xlu0 %v109
      %v111 = vpop.xlane.xlu0 %110
      %vm112 = vcmask 7168
      %v113 = vsel %vm112, %v106, %v111
      %p114 = scmp.eq.s32.totalorder %s12, 0
      // Predicated region
      $region25: #{dense_block_forward.6} parent=23 // pred_check
        %p115 = pneg %p114
      $region26: #{dense_block_forward.6} parent=23 // pred_check_branch
        %117 = sbr.rel (%p115) target = $region28
      $region27: #{dense_block_forward.6} parent=23 // pred_region
        %vm118 = vcmask 15360
        %119 = vst.msk [vmem:[%s1] sm:$0xff] %vm118, 0.0
      $region28: #{dense_block_forward.6} parent=23 // pred_fallthru
        _
      %v120 = vld [vmem:[%s1] sm:$0xff]
      %v121 = vadd.f32 %v120, %v113
      %vm122 = vcmask 15360
      %123 = vst.msk [vmem:[%s1] sm:$0xff] %vm122, %v121
      // Predicated region
      $region29: #{dense_block_forward.6} parent=23 // pred_check
        %p124 = pneg %p51
      $region30: #{dense_block_forward.6} parent=23 // pred_check_branch
        %126 = sbr.rel (%p124) target = $region32
      $region31: #{dense_block_forward.6} parent=23 // pred_region
        _
      $region32: #{dense_block_forward.6} parent=23 // pred_fallthru
        _
      // Predicated region
      $region33: #{dense_block_forward.6} parent=23 // pred_check
        %p127 = pneg %p51
      $region34: #{dense_block_forward.6} parent=23 // pred_check_branch
        %129 = sbr.rel (%p127) target = $region36
      $region35: #{dense_block_forward.6} parent=23 // pred_region
        _
      $region36: #{dense_block_forward.6} parent=23 // pred_fallthru
        _
    $region24: #{dense_block_forward.6} parent=5 // pred_fallthru
      _
    %p130 = scmp.le.s32.totalorder 2, %s7
    // Predicated region
    $region37: #{dense_block_forward.6} parent=5 // pred_check
      %p131 = pneg %p130
    $region38: #{dense_block_forward.6} parent=5 // pred_check_branch
      %133 = sbr.rel (%p131) target = $region40
    $region39: #{dense_block_forward.6} parent=5 // pred_region
      %s134 = ssub.s32 %s7, 2
    $region40: #{dense_block_forward.6} parent=5 // pred_fallthru
      _
  $region6: #{dense_block_forward.6} parent=0 // loop_footer
    %s11 = sadd.s32 1, %s7
  $region7: #{dense_block_forward.6} parent=0 // loop_footer_branch
    %6 = sbr.rel target = $region3
  $region8: #{dense_block_forward.6} parent=0 // loop_exit
    _

// kernel: dense_block_forward.4
$region0: #{dense_block_forward.4}
  #allocation0 [shape = 'u32[]', space=smem, size = 0x4, offset = 0x4, fixed_abs, tag = 'smem constant byte address 0x4 - core index']
  #allocation1 [shape = 'u32[144,128]{1,0:T(1,128)}', space=vmem, size = 0x12000, scoped, tag = 'internal scratch']
  %s0 = inlined_call_operand.vmem [shape: f32[2,12,256], index: 0, kind: input, shape index: {}]
  %s1 = inlined_call_operand.vmem [shape: f32[4,2], index: 1, kind: output, shape index: {}]
  %s2 = sld [smem:[#allocation0]]
  $region41: #{dense_block_forward.4} parent=0
    _
  %s4 = ssub.s32 1, %s2
  %s5 = scalar_select 0, %s4, %s2
  loop: start=0, step=1, limit=4
  $region2: #{dense_block_forward.4} parent=0 // loop_pre_header
    _
  $region3: #{dense_block_forward.4} parent=0 // loop_header
    %s7 = sphi 0, %s11
    %p8 = scmp.ge.s32.totalorder %s7, 4
    %s17 = sphi 0, %s19
    %s20 = sphi 0, %s17
    %s21 = sphi 0, %s20
    %s37 = sphi 0, %s21
    %s41 = sphi 0, %s41
    %s43 = sphi 0, %s41
    %s44 = sphi 0, %s43
    %s58 = sphi 0, %s44
  $region4: #{dense_block_forward.4} parent=0 // loop_header_branch
    %10 = sbr.rel (%p8) target = $region8
  $region5: #{dense_block_forward.4} parent=0 // loop_body
    %s12 = ssub.s32 %s7, 1
    %s13 = ssub.s32 %s7, 2
    %s14 = sadd.s32 %s7, 1
    %s15 = ssub.s32 %s7, %s14
    %p16 = scmp.eq.s32.totalorder %s15, 0
    %s18 = sadd.s32 %s17, 1
    %s19 = scalar_select %p16, %s17, %s18
    %p22 = pneg %p16
    %p23 = scmp.eq.s32.totalorder %s7, 1
    %p24 = por %p22, %p23
    %p25 = scmp.ne.s32.totalorder %s17, %s20
    %p26 = scmp.eq.s32.totalorder %s7, 0
    %p27 = por %p25, %p26
    %p28 = scmp.ne.s32.totalorder %s17, %s20
    %p29 = scmp.eq.s32.totalorder %s12, 1
    %p30 = por %p28, %p29
    %p31 = scmp.ne.s32.totalorder %s20, %s21
    %p32 = scmp.eq.s32.totalorder %s12, 0
    %p33 = por %p31, %p32
    %p34 = scmp.ne.s32.totalorder %s20, %s21
    %p35 = scmp.eq.s32.totalorder %s13, 1
    %p36 = por %p34, %p35
    %p38 = scmp.ne.s32.totalorder %s21, %s37
    %p39 = scmp.eq.s32.totalorder %s13, 0
    %p40 = por %p38, %p39
    %s42 = sadd.s32 %s41, 1
    %p45 = scmp.eq.s32.totalorder %s7, 1
    %p46 = scmp.ne.s32.totalorder %s41, %s43
    %p47 = scmp.eq.s32.totalorder %s7, 0
    %p48 = por %p46, %p47
    %p49 = scmp.ne.s32.totalorder %s41, %s43
    %p50 = scmp.eq.s32.totalorder %s12, 1
    %p51 = por %p49, %p50
    %p52 = scmp.ne.s32.totalorder %s43, %s44
    %p53 = scmp.eq.s32.totalorder %s12, 0
    %p54 = por %p52, %p53
    %p55 = scmp.ne.s32.totalorder %s43, %s44
    %p56 = scmp.eq.s32.totalorder %s13, 1
    %p57 = por %p55, %p56
    %p59 = scmp.ne.s32.totalorder %s44, %s58
    %p60 = scmp.eq.s32.totalorder %s13, 0
    %p61 = por %p59, %p60
    %p62 = scmp.le.s32.totalorder 1, %s7
    %p63 = scmp.lt.s32.totalorder %s7, 3
    %p64 = pnand %p62, %p63
    %p65 = pneg %p64
    // Predicated region
    $region9: #{dense_block_forward.4} parent=5 // pred_check
      _
    $region10: #{dense_block_forward.4} parent=5 // pred_check_branch
      %67 = sbr.rel (%p64) target = $region12
    $region11: #{dense_block_forward.4} parent=5 // pred_region
      %s68 = ssub.s32 %s7, 1
    $region12: #{dense_block_forward.4} parent=5 // pred_fallthru
      _
    %p69 = scmp.lt.s32.totalorder %s7, 2
    // Predicated region
    $region13: #{dense_block_forward.4} parent=5 // pred_check
      %p70 = pneg %p69
    $region14: #{dense_block_forward.4} parent=5 // pred_check_branch
      %72 = sbr.rel (%p70) target = $region16
    $region15: #{dense_block_forward.4} parent=5 // pred_region
      // Predicated region
      $region17: #{dense_block_forward.4} parent=15 // pred_check
        %p73 = pneg %p27
      $region18: #{dense_block_forward.4} parent=15 // pred_check_branch
        %75 = sbr.rel (%p73) target = $region20
      $region19: #{dense_block_forward.4} parent=15 // pred_region
        %p76 = scmp.lt.s32.totalorder %s7, 1
        %s77 = scalar_select %p76, %s7, 1
        %s78 = smul.addr %s77, 4
        %s79 = smul.addr %s78, 8
        %s80 = scalar_lea.vmem %s0, %s79
      $region20: #{dense_block_forward.4} parent=15 // pred_fallthru
        _
    $region16: #{dense_block_forward.4} parent=5 // pred_fallthru
      _
    %p81 = scmp.le.s32.totalorder 1, %s7
    %p82 = scmp.lt.s32.totalorder %s7, 3
    %p83 = pnand %p81, %p82
    %p84 = pneg %p83
    // Predicated region
    $region21: #{dense_block_forward.4} parent=5 // pred_check
      _
    $region22: #{dense_block_forward.4} parent=5 // pred_check_branch
      %86 = sbr.rel (%p83) target = $region24
    $region23: #{dense_block_forward.4} parent=5 // pred_region
      %s87 = ssub.s32 %s7, 1
      %p88 = scmp.lt.s32.totalorder %s12, 1
      %s89 = scalar_select %p88, %s12, 1
      %s90 = smul.addr %s89, 4
      %s91 = smul.addr %s90, 8
      %s92 = scalar_lea.vmem %s0, %s91
      %p93 = pneg %p33
      %p94 = pneg %p30
      %p95 = pneg %p54
      %p96 = pneg %p51
      %p97 = scmp.lt.s32.totalorder %s12, 1
      %s98 = scalar_select %p97, %s12, 1
      %s99 = smul.addr %s98, 4
      %s100 = smul.addr %s99, 8
      %s101 = scalar_lea.vmem %s0, %s100
      %v102 = vld [vmem:[%s101] sm:$0xf]
      %v103 = vld [vmem:[%s101 + $0x8] sm:$0xf]
      %vm104 = vcmask 1043456
      %v105 = vsel %vm104, %v102, 0.0
      %v106 = vsel %vm104, %v103, 0.0
      %v107 = vadd.f32 %v105, %v106
      %108 = vadd.xlane.f32.xlu0 %v107
      %v109 = vpop.xlane.xlu0 %108
      %v110 = vmul.f32 %v102, %v102
      %v111 = vmul.f32 %v103, %v103
      %v112 = vsel %vm104, %v110, 0.0
      %v113 = vsel %vm104, %v111, 0.0
      %v114 = vadd.f32 %v112, %v113
      %115 = vadd.xlane.f32.xlu0 %v114
      %v116 = vpop.xlane.xlu0 %115
      %vm117 = vcmask 7168
      %v118 = vsel %vm117, %v109, %v116
      %p119 = scmp.eq.s32.totalorder %s12, 0
      // Predicated region
      $region25: #{dense_block_forward.4} parent=23 // pred_check
        %p120 = pneg %p119
      $region26: #{dense_block_forward.4} parent=23 // pred_check_branch
        %122 = sbr.rel (%p120) target = $region28
      $region27: #{dense_block_forward.4} parent=23 // pred_region
        %vm123 = vcmask 11264
        %124 = vst.msk [vmem:[%s1] sm:$0xf] %vm123, 0.0
      $region28: #{dense_block_forward.4} parent=23 // pred_fallthru
        _
      %v125 = vld [vmem:[%s1] sm:$0xf]
      %v126 = vadd.f32 %v125, %v118
      %vm127 = vcmask 11264
      %128 = vst.msk [vmem:[%s1] sm:$0xf] %vm127, %v126
      // Predicated region
      $region29: #{dense_block_forward.4} parent=23 // pred_check
        %p129 = pneg %p51
      $region30: #{dense_block_forward.4} parent=23 // pred_check_branch
        %131 = sbr.rel (%p129) target = $region32
      $region31: #{dense_block_forward.4} parent=23 // pred_region
        _
      $region32: #{dense_block_forward.4} parent=23 // pred_fallthru
        _
      // Predicated region
      $region33: #{dense_block_forward.4} parent=23 // pred_check
        %p132 = pneg %p51
      $region34: #{dense_block_forward.4} parent=23 // pred_check_branch
        %134 = sbr.rel (%p132) target = $region36
      $region35: #{dense_block_forward.4} parent=23 // pred_region
        _
      $region36: #{dense_block_forward.4} parent=23 // pred_fallthru
        _
    $region24: #{dense_block_forward.4} parent=5 // pred_fallthru
      _
    %p135 = scmp.le.s32.totalorder 2, %s7
    // Predicated region
    $region37: #{dense_block_forward.4} parent=5 // pred_check
      %p136 = pneg %p135
    $region38: #{dense_block_forward.4} parent=5 // pred_check_branch
      %138 = sbr.rel (%p136) target = $region40
    $region39: #{dense_block_forward.4} parent=5 // pred_region
      %s139 = ssub.s32 %s7, 2
    $region40: #{dense_block_forward.4} parent=5 // pred_fallthru
      _
  $region6: #{dense_block_forward.4} parent=0 // loop_footer
    %s11 = sadd.s32 1, %s7
  $region7: #{dense_block_forward.4} parent=0 // loop_footer_branch
    %6 = sbr.rel target = $region3
  $region8: #{dense_block_forward.4} parent=0 // loop_exit
    _

// kernel: dense_block_forward.5
$region0: #{dense_block_forward.5}
  #allocation0 [shape = 'u32[]', space=smem, size = 0x4, offset = 0x4, fixed_abs, tag = 'smem constant byte address 0x4 - core index']
  #allocation1 [shape = 'u32[144,128]{1,0:T(1,128)}', space=vmem, size = 0x12000, scoped, tag = 'internal scratch']
  %s0 = inlined_call_operand.vmem [shape: f32[2,12,256], index: 0, kind: input, shape index: {}]
  %s1 = inlined_call_operand.vmem [shape: f32[4,1], index: 1, kind: input, shape index: {}]
  %s2 = inlined_call_operand.vmem [shape: f32[4,1], index: 2, kind: input, shape index: {}]
  %s3 = inlined_call_operand.vmem [shape: f32[2,256], index: 3, kind: input, shape index: {}]
  %s4 = inlined_call_operand.vmem [shape: f32[4,36], index: 4, kind: input, shape index: {}]
  %s5 = inlined_call_operand.vmem [shape: f32[2,4,256], index: 5, kind: output, shape index: {}]
  %s6 = sld [smem:[#allocation0]]
  $region53: #{dense_block_forward.5} parent=0
    _
  %s8 = ssub.s32 1, %s6
  %s9 = scalar_select 0, %s8, %s6
  loop: start=0, step=1, limit=4
  $region2: #{dense_block_forward.5} parent=0 // loop_pre_header
    _
  $region3: #{dense_block_forward.5} parent=0 // loop_header
    %s11 = sphi 0, %s15
    %p12 = scmp.ge.s32.totalorder %s11, 4
    %s21 = sphi 0, %s23
    %s24 = sphi 0, %s21
    %s25 = sphi 0, %s24
    %s41 = sphi 0, %s25
    %s45 = sphi 0, %s45
    %s47 = sphi 0, %s45
    %s48 = sphi 0, %s47
    %s62 = sphi 0, %s48
    %s66 = sphi 0, %s66
    %s68 = sphi 0, %s66
    %s69 = sphi 0, %s68
    %s83 = sphi 0, %s69
    %s87 = sphi 0, %s87
    %s89 = sphi 0, %s87
    %s90 = sphi 0, %s89
    %s104 = sphi 0, %s90
    %s108 = sphi 0, %s108
    %s110 = sphi 0, %s108
    %s111 = sphi 0, %s110
    %s125 = sphi 0, %s111
    %s131 = sphi 0, %s133
    %s134 = sphi 0, %s131
    %s135 = sphi 0, %s134
    %s151 = sphi 0, %s135
  $region4: #{dense_block_forward.5} parent=0 // loop_header_branch
    %14 = sbr.rel (%p12) target = $region8
  $region5: #{dense_block_forward.5} parent=0 // loop_body
    %s16 = ssub.s32 %s11, 1
    %s17 = ssub.s32 %s11, 2
    %s18 = sadd.s32 %s11, 1
    %s19 = ssub.s32 %s11, %s18
    %p20 = scmp.eq.s32.totalorder %s19, 0
    %s22 = sadd.s32 %s21, 1
    %s23 = scalar_select %p20, %s21, %s22
    %p26 = pneg %p20
    %p27 = scmp.eq.s32.totalorder %s11, 1
    %p28 = por %p26, %p27
    %p29 = scmp.ne.s32.totalorder %s21, %s24
    %p30 = scmp.eq.s32.totalorder %s11, 0
    %p31 = por %p29, %p30
    %p32 = scmp.ne.s32.totalorder %s21, %s24
    %p33 = scmp.eq.s32.totalorder %s16, 1
    %p34 = por %p32, %p33
    %p35 = scmp.ne.s32.totalorder %s24, %s25
    %p36 = scmp.eq.s32.totalorder %s16, 0
    %p37 = por %p35, %p36
    %p38 = scmp.ne.s32.totalorder %s24, %s25
    %p39 = scmp.eq.s32.totalorder %s17, 1
    %p40 = por %p38, %p39
    %p42 = scmp.ne.s32.totalorder %s25, %s41
    %p43 = scmp.eq.s32.totalorder %s17, 0
    %p44 = por %p42, %p43
    %s46 = sadd.s32 %s45, 1
    %p49 = scmp.eq.s32.totalorder %s11, 1
    %p50 = scmp.ne.s32.totalorder %s45, %s47
    %p51 = scmp.eq.s32.totalorder %s11, 0
    %p52 = por %p50, %p51
    %p53 = scmp.ne.s32.totalorder %s45, %s47
    %p54 = scmp.eq.s32.totalorder %s16, 1
    %p55 = por %p53, %p54
    %p56 = scmp.ne.s32.totalorder %s47, %s48
    %p57 = scmp.eq.s32.totalorder %s16, 0
    %p58 = por %p56, %p57
    %p59 = scmp.ne.s32.totalorder %s47, %s48
    %p60 = scmp.eq.s32.totalorder %s17, 1
    %p61 = por %p59, %p60
    %p63 = scmp.ne.s32.totalorder %s48, %s62
    %p64 = scmp.eq.s32.totalorder %s17, 0
    %p65 = por %p63, %p64
    %s67 = sadd.s32 %s66, 1
    %p70 = scmp.eq.s32.totalorder %s11, 1
    %p71 = scmp.ne.s32.totalorder %s66, %s68
    %p72 = scmp.eq.s32.totalorder %s11, 0
    %p73 = por %p71, %p72
    %p74 = scmp.ne.s32.totalorder %s66, %s68
    %p75 = scmp.eq.s32.totalorder %s16, 1
    %p76 = por %p74, %p75
    %p77 = scmp.ne.s32.totalorder %s68, %s69
    %p78 = scmp.eq.s32.totalorder %s16, 0
    %p79 = por %p77, %p78
    %p80 = scmp.ne.s32.totalorder %s68, %s69
    %p81 = scmp.eq.s32.totalorder %s17, 1
    %p82 = por %p80, %p81
    %p84 = scmp.ne.s32.totalorder %s69, %s83
    %p85 = scmp.eq.s32.totalorder %s17, 0
    %p86 = por %p84, %p85
    %s88 = sadd.s32 %s87, 1
    %p91 = scmp.eq.s32.totalorder %s11, 1
    %p92 = scmp.ne.s32.totalorder %s87, %s89
    %p93 = scmp.eq.s32.totalorder %s11, 0
    %p94 = por %p92, %p93
    %p95 = scmp.ne.s32.totalorder %s87, %s89
    %p96 = scmp.eq.s32.totalorder %s16, 1
    %p97 = por %p95, %p96
    %p98 = scmp.ne.s32.totalorder %s89, %s90
    %p99 = scmp.eq.s32.totalorder %s16, 0
    %p100 = por %p98, %p99
    %p101 = scmp.ne.s32.totalorder %s89, %s90
    %p102 = scmp.eq.s32.totalorder %s17, 1
    %p103 = por %p101, %p102
    %p105 = scmp.ne.s32.totalorder %s90, %s104
    %p106 = scmp.eq.s32.totalorder %s17, 0
    %p107 = por %p105, %p106
    %s109 = sadd.s32 %s108, 1
    %p112 = scmp.eq.s32.totalorder %s11, 1
    %p113 = scmp.ne.s32.totalorder %s108, %s110
    %p114 = scmp.eq.s32.totalorder %s11, 0
    %p115 = por %p113, %p114
    %p116 = scmp.ne.s32.totalorder %s108, %s110
    %p117 = scmp.eq.s32.totalorder %s16, 1
    %p118 = por %p116, %p117
    %p119 = scmp.ne.s32.totalorder %s110, %s111
    %p120 = scmp.eq.s32.totalorder %s16, 0
    %p121 = por %p119, %p120
    %p122 = scmp.ne.s32.totalorder %s110, %s111
    %p123 = scmp.eq.s32.totalorder %s17, 1
    %p124 = por %p122, %p123
    %p126 = scmp.ne.s32.totalorder %s111, %s125
    %p127 = scmp.eq.s32.totalorder %s17, 0
    %p128 = por %p126, %p127
    %s129 = ssub.s32 %s11, %s18
    %p130 = scmp.eq.s32.totalorder %s129, 0
    %s132 = sadd.s32 %s131, 1
    %s133 = scalar_select %p130, %s131, %s132
    %p136 = pneg %p130
    %p137 = scmp.eq.s32.totalorder %s11, 1
    %p138 = por %p136, %p137
    %p139 = scmp.ne.s32.totalorder %s131, %s134
    %p140 = scmp.eq.s32.totalorder %s11, 0
    %p141 = por %p139, %p140
    %p142 = scmp.ne.s32.totalorder %s131, %s134
    %p143 = scmp.eq.s32.totalorder %s16, 1
    %p144 = por %p142, %p143
    %p145 = scmp.ne.s32.totalorder %s134, %s135
    %p146 = scmp.eq.s32.totalorder %s16, 0
    %p147 = por %p145, %p146
    %p148 = scmp.ne.s32.totalorder %s134, %s135
    %p149 = scmp.eq.s32.totalorder %s17, 1
    %p150 = por %p148, %p149
    %p152 = scmp.ne.s32.totalorder %s135, %s151
    %p153 = scmp.eq.s32.totalorder %s17, 0
    %p154 = por %p152, %p153
    %p155 = scmp.le.s32.totalorder 1, %s11
    %p156 = scmp.lt.s32.totalorder %s11, 3
    %p157 = pnand %p155, %p156
    %p158 = pneg %p157
    // Predicated region
    $region9: #{dense_block_forward.5} parent=5 // pred_check
      _
    $region10: #{dense_block_forward.5} parent=5 // pred_check_branch
      %160 = sbr.rel (%p157) target = $region12
    $region11: #{dense_block_forward.5} parent=5 // pred_region
      %s161 = ssub.s32 %s11, 1
      // Predicated region
      $region13: #{dense_block_forward.5} parent=11 // pred_check
        %p162 = pneg %p58
      $region14: #{dense_block_forward.5} parent=11 // pred_check_branch
        %164 = sbr.rel (%p162) target = $region16
      $region15: #{dense_block_forward.5} parent=11 // pred_region
        _
      $region16: #{dense_block_forward.5} parent=11 // pred_fallthru
        _
      // Predicated region
      $region17: #{dense_block_forward.5} parent=11 // pred_check
        %p165 = pneg %p79
      $region18: #{dense_block_forward.5} parent=11 // pred_check_branch
        %167 = sbr.rel (%p165) target = $region20
      $region19: #{dense_block_forward.5} parent=11 // pred_region
        _
      $region20: #{dense_block_forward.5} parent=11 // pred_fallthru
        _
      // Predicated region
      $region21: #{dense_block_forward.5} parent=11 // pred_check
        %p168 = pneg %p100
      $region22: #{dense_block_forward.5} parent=11 // pred_check_branch
        %170 = sbr.rel (%p168) target = $region24
      $region23: #{dense_block_forward.5} parent=11 // pred_region
        _
      $region24: #{dense_block_forward.5} parent=11 // pred_fallthru
        _
      // Predicated region
      $region25: #{dense_block_forward.5} parent=11 // pred_check
        %p171 = pneg %p121
      $region26: #{dense_block_forward.5} parent=11 // pred_check_branch
        %173 = sbr.rel (%p171) target = $region28
      $region27: #{dense_block_forward.5} parent=11 // pred_region
        _
      $region28: #{dense_block_forward.5} parent=11 // pred_fallthru
        _
    $region12: #{dense_block_forward.5} parent=5 // pred_fallthru
      _
    %p174 = scmp.lt.s32.totalorder %s11, 2
    // Predicated region
    $region29: #{dense_block_forward.5} parent=5 // pred_check
      %p175 = pneg %p174
    $region30: #{dense_block_forward.5} parent=5 // pred_check_branch
      %177 = sbr.rel (%p175) target = $region32
    $region31: #{dense_block_forward.5} parent=5 // pred_region
      // Predicated region
      $region33: #{dense_block_forward.5} parent=31 // pred_check
        %p178 = pneg %p31
      $region34: #{dense_block_forward.5} parent=31 // pred_check_branch
        %180 = sbr.rel (%p178) target = $region36
      $region35: #{dense_block_forward.5} parent=31 // pred_region
        %p181 = scmp.lt.s32.totalorder %s11, 1
        %s182 = scalar_select %p181, %s11, 1
        %s183 = smul.addr %s182, 4
        %s184 = smul.addr %s183, 8
        %s185 = scalar_lea.vmem %s0, %s184
      $region36: #{dense_block_forward.5} parent=31 // pred_fallthru
        _
    $region32: #{dense_block_forward.5} parent=5 // pred_fallthru
      _
    %p186 = scmp.le.s32.totalorder 1, %s11
    %p187 = scmp.lt.s32.totalorder %s11, 3
    %p188 = pnand %p186, %p187
    %p189 = pneg %p188
    // Predicated region
    $region37: #{dense_block_forward.5} parent=5 // pred_check
      _
    $region38: #{dense_block_forward.5} parent=5 // pred_check_branch
      %191 = sbr.rel (%p188) target = $region40
    $region39: #{dense_block_forward.5} parent=5 // pred_region
      %s192 = ssub.s32 %s11, 1
      %p193 = scmp.lt.s32.totalorder %s16, 1
      %s194 = scalar_select %p193, %s16, 1
      %s195 = smul.addr %s194, 4
      %s196 = smul.addr %s195, 8
      %s197 = scalar_lea.vmem %s0, %s196
      %p198 = pneg %p37
      %p199 = pneg %p34
      %p200 = pneg %p58
      %p201 = pneg %p55
      %p202 = pneg %p79
      %p203 = pneg %p76
      %p204 = pneg %p100
      %p205 = pneg %p97
      %p206 = pneg %p121
      %p207 = pneg %p118
      %p208 = pneg %p147
      %p209 = pneg %p144
      %p210 = scmp.lt.s32.totalorder %s16, 1
      %s211 = scalar_select %p210, %s16, 1
      %s212 = smul.addr %s211, 2
      %s213 = smul.addr %s212, 4
      %s214 = scalar_lea.vmem %s5, %s213
      %p215 = scmp.lt.s32.totalorder %s16, 1
      %s216 = scalar_select %p215, %s16, 1
      %s217 = smul.addr %s216, 4
      %s218 = smul.addr %s217, 8
      %s219 = scalar_lea.vmem %s0, %s218
      %p220 = scmp.lt.s32.totalorder %s16, 1
      %s221 = scalar_select %p220, %s16, 1
      %s222 = smul.addr %s221, 2
      %s223 = smul.addr %s222, 4
      %s224 = scalar_lea.vmem %s5, %s223
      %v225 = vld [vmem:[%s219] sm:$0xf]
      %v226 = vld [vmem:[%s219 + $0x8] sm:$0xf]
      %v227 = vld [vmem:[%s1] sm:$0xf]
      %229 = vset.pattern.permute.xlu0 0
      %230 = vperm.xlu0 %229, %v227
      %v231 = vpop.permute.xlu0 %230
      %v233 = vmul.f32 %v225, %v231
      %v234 = vmul.f32 %v226, %v231
      %v235 = vld [vmem:[%s2] sm:$0xf]
      %237 = vset.pattern.permute.xlu0 0
      %238 = vperm.xlu0 %237, %v235
      %v239 = vpop.permute.xlu0 %238
      %v241 = vadd.f32 %v233, %v239
      %v242 = vadd.f32 %v234, %v239
      %v243 = vmax.f32 %v241, 0.0
      %v244 = vmax.f32 %v242, 0.0
      %247 = vrot.lane.b32.xlu0 %v243, 17
      %v248 = vpop.permute.xlu0 %247
      %249 = vrot.lane.b32.xlu0 %v244, 17
      %v250 = vpop.permute.xlu0 %249
      %vm251 = vcmask 138240
      %v252 = vsel %vm251, %v248, %v250
      %v256 = vsel %vm251, 0.0, %v248
      %v257 = vsel %vm251, %v250, 0.0
      %v258 = vld [vmem:[%s3] ss:$2 sm:$0x3]
      %s259 = scalar_lea.vmem %s3, 1
      %v260 = vld [vmem:[%s259] ss:$2 sm:$0x3]
      %v262 = vlaneseq
      %v263 = vshrl.u32 %v262, 7
      %v264 = vsub.s32 0, %v263
      %v265 = vrot.slane %v258, %v264
      %v266 = vlaneseq
      %v267 = vshrl.u32 %v266, 7
      %v268 = vsub.s32 1, %v267
      %v269 = vrot.slane %v258, %v268
      %v272 = vmul.f32 %v256, %v265
      %v273 = vmul.f32 %v252, %v269
      %v275 = vlaneseq
      %v276 = vshrl.u32 %v275, 7
      %v277 = vsub.s32 0, %v276
      %v278 = vrot.slane %v260, %v277
      %v279 = vlaneseq
      %v280 = vshrl.u32 %v279, 7
      %v281 = vsub.s32 1, %v280
      %v282 = vrot.slane %v260, %v281
      %283 = vrot.lane.b32.xlu0 %v278, 2
      %v284 = vpop.permute.xlu0 %283
      %285 = vrot.lane.b32.xlu0 %v282, 2
      %v286 = vpop.permute.xlu0 %285
      %vm287 = vcmask 15360
      %v288 = vsel %vm287, %v284, %v286
      %v292 = vmul.f32 %v256, %v284
      %v293 = vmul.f32 %v252, %v288
      %v294 = vmul.f32 %v257, %v286
      %295 = vrot.lane.b32.xlu0 %v265, 16
      %v296 = vpop.permute.xlu0 %295
      %297 = vrot.lane.b32.xlu0 %v269, 16
      %v298 = vpop.permute.xlu0 %297
      %vm299 = vcmask 130048
      %v300 = vsel %vm299, %v296, %v298
      %v304 = vmul.f32 %v256, %v296
      %v305 = vmul.f32 %v252, %v300
      %v306 = vmul.f32 %v257, %v298
      %307 = vrot.lane.b32.xlu0 %v278, 18
      %v308 = vpop.permute.xlu0 %307
      %309 = vrot.lane.b32.xlu0 %v282, 18
      %v310 = vpop.permute.xlu0 %309
      %vm311 = vcmask 146432
      %v312 = vsel %vm311, %v308, %v310
      %v316 = vmul.f32 %v256, %v308
      %v317 = vmul.f32 %v252, %v312
      %v318 = vmul.f32 %v257, %v310
      %319 = vrot.lane.b32.xlu0 %v265, 32
      %v320 = vpop.permute.xlu0 %319
      %321 = vrot.lane.b32.xlu0 %v269, 32
      %v322 = vpop.permute.xlu0 %321
      %vm323 = vcmask 261120
      %v324 = vsel %vm323, %v320, %v322
      %v328 = vmul.f32 %v256, %v320
      %v329 = vmul.f32 %v252, %v324
      %v330 = vmul.f32 %v257, %v322
      %331 = vrot.lane.b32.xlu0 %v278, 34
      %v332 = vpop.permute.xlu0 %331
      %333 = vrot.lane.b32.xlu0 %v282, 34
      %v334 = vpop.permute.xlu0 %333
      %vm335 = vcmask 277504
      %v336 = vsel %vm335, %v332, %v334
      %v340 = vmul.f32 %v256, %v332
      %v341 = vmul.f32 %v252, %v336
      %v342 = vmul.f32 %v257, %v334
      %v345 = vrot.slane %v256, 4
      %v346 = vrot.slane %v252, 4
      %v347 = vrot.slane %v257, 4
      %348 = vrot.lane.b32.xlu0 %v345, 127
      %v349 = vpop.permute.xlu0 %348
      %350 = vrot.lane.b32.xlu0 %v346, 127
      %v351 = vpop.permute.xlu0 %350
      %352 = vrot.lane.b32.xlu0 %v347, 127
      %v353 = vpop.permute.xlu0 %352
      %vm354 = vcmask 1039360
      %v355 = vsel %vm354, %v349, %v351
      %v356 = vsel %vm354, %v351, %v353
      %362 = vrot.lane.b32.xlu0 %v292, 126
      %v363 = vpop.permute.xlu0 %362
      %364 = vrot.lane.b32.xlu0 %v293, 126
      %v365 = vpop.permute.xlu0 %364
      %366 = vrot.lane.b32.xlu0 %v294, 126
      %v367 = vpop.permute.xlu0 %366
      %vm368 = vcmask 1031168
      %v369 = vsel %vm368, %v363, %v365
      %v370 = vsel %vm368, %v365, %v367
      %v376 = vrot.slane %v304, 4
      %v377 = vrot.slane %v305, 4
      %v378 = vrot.slane %v306, 4
      %379 = vrot.lane.b32.xlu0 %v376, 112
      %v380 = vpop.permute.xlu0 %379
      %381 = vrot.lane.b32.xlu0 %v377, 112
      %v382 = vpop.permute.xlu0 %381
      %383 = vrot.lane.b32.xlu0 %v378, 112
      %v384 = vpop.permute.xlu0 %383
      %vm385 = vcmask 916480
      %v386 = vsel %vm385, %v380, %v382
      %v387 = vsel %vm385, %v382, %v384
      %390 = vrot.lane.b32.xlu0 %v256, 111
      %v391 = vpop.permute.xlu0 %390
      %392 = vrot.lane.b32.xlu0 %v252, 111
      %v393 = vpop.permute.xlu0 %392
      %394 = vrot.lane.b32.xlu0 %v257, 111
      %v395 = vpop.permute.xlu0 %394
      %vm396 = vcmask 908288
      %v397 = vsel %vm396, %v391, %v393
      %v398 = vsel %vm396, %v393, %v395
      %v404 = vrot.slane %v316, 4
      %v405 = vrot.slane %v317, 4
      %v406 = vrot.slane %v318, 4
      %407 = vrot.lane.b32.xlu0 %v404, 110
      %v408 = vpop.permute.xlu0 %407
      %409 = vrot.lane.b32.xlu0 %v405, 110
      %v410 = vpop.permute.xlu0 %409
      %411 = vrot.lane.b32.xlu0 %v406, 110
      %v412 = vpop.permute.xlu0 %411
      %vm413 = vcmask 900096
      %v414 = vsel %vm413, %v408, %v410
      %v415 = vsel %vm413, %v410, %v412
      %421 = vrot.lane.b32.xlu0 %v328, 96
      %v422 = vpop.permute.xlu0 %421
      %423 = vrot.lane.b32.xlu0 %v329, 96
      %v424 = vpop.permute.xlu0 %423
      %425 = vrot.lane.b32.xlu0 %v330, 96
      %v426 = vpop.permute.xlu0 %425
      %vm427 = vcmask 785408
      %v428 = vsel %vm427, %v422, %v424
      %v429 = vsel %vm427, %v424, %v426
      %432 = vrot.lane.b32.xlu0 %v345, 95
      %v433 = vpop.permute.xlu0 %432
      %434 = vrot.lane.b32.xlu0 %v346, 95
      %v435 = vpop.permute.xlu0 %434
      %436 = vrot.lane.b32.xlu0 %v347, 95
      %v437 = vpop.permute.xlu0 %436
      %vm438 = vcmask 777216
      %v439 = vsel %vm438, %v433, %v435
      %v440 = vsel %vm438, %v435, %v437
      %446 = vrot.lane.b32.xlu0 %v340, 94
      %v447 = vpop.permute.xlu0 %446
      %448 = vrot.lane.b32.xlu0 %v341, 94
      %v449 = vpop.permute.xlu0 %448
      %450 = vrot.lane.b32.xlu0 %v342, 94
      %v451 = vpop.permute.xlu0 %450
      %vm452 = vcmask 769024
      %v453 = vsel %vm452, %v447, %v449
      %v454 = vsel %vm452, %v449, %v451
      %vm455 = vcmask 1043456
      %v456 = vsel %vm455, %v272, %v355
      %v457 = vsel %vm455, %v273, %v356
      %v458 = vsel %vm455, %v369, %v386
      %v459 = vsel %vm455, %v370, %v387
      %v460 = vsel %vm455, %v397, %v414
      %v461 = vsel %vm455, %v398, %v415
      %v462 = vsel %vm455, %v428, %v439
      %v463 = vsel %vm455, %v429, %v440
      %v464 = vld [vmem:[%s4] sm:$0xf]
      %vm465 = vcmask 293888
      %v467 = vsel %vm465, %v464, 0
      %v469 = vsel %vm455, %v453, 0
      %v471 = vsel %vm455, %v454, 0
      %473 = vmatprep.subr.mxu0 0.0
      %474 = vmatpush1.msra.mxu0 0.0
      %475 = vmatprep.subr.mxu0 0.0
      %476 = vmatpush1.msra.mxu0 0.0
      %477 = vmatprep.subr.mxu0 0.0
      %478 = vmatpush1.msra.mxu0 0.0
      %479 = vmatprep.subr.mxu0 0.0
      %480 = vmatpush1.msra.mxu0 0.0
      %481 = vmatprep.subr.mxu0 0.0
      %482 = vmatpush1.msra.mxu0 0.0
      %483 = vmatprep.subr.mxu0 0.0
      %484 = vmatpush1.msra.mxu0 0.0
      %485 = vmatprep.subr.mxu0 0.0
      %486 = vmatpush1.msra.mxu0 0.0
      %487 = vmatprep.subr.mxu0 0.0
      %488 = vmatpush1.msra.mxu0 0.0
      %489 = vmatprep.subr.mxu0 0.0
      %490 = vmatpush1.msra.mxu0 0.0
      %491 = vmatprep.subr.mxu0 0.0
      %492 = vmatpush1.msra.mxu0 0.0
      %493 = vmatprep.subr.mxu0 0.0
      %494 = vmatpush1.msra.mxu0 0.0
      %495 = vmatprep.subr.mxu0 %v471
      %496 = vmatpush1.msra.mxu0 %v469
      %497 = vmatprep.subr.mxu0 %v463
      %498 = vmatpush1.msra.mxu0 %v462
      %499 = vmatprep.subr.mxu0 %v461
      %500 = vmatpush1.msra.mxu0 %v460
      %501 = vmatprep.subr.mxu0 %v459
      %502 = vmatpush1.msra.mxu0 %v458
      %503 = vmatprep.subr.mxu0 %v457
      %504 = vmatpush1.msra.mxu0 %v456
      %505 = vmatprep.subr.mxu0 0.0
      %506 = vmatpush2.msra.mxu0 0.0
      %507 = vmatprep.subr.mxu0 0.0
      %508 = vmatpush2.msra.mxu0 0.0
      %509 = vmatprep.subr.mxu0 0.0
      %510 = vmatpush2.msra.mxu0 0.0
      %511 = vmatprep.subr.mxu0 0.0
      %512 = vmatpush2.msra.mxu0 0.0
      %513 = vmatprep.subr.mxu0 0.0
      %514 = vmatpush2.msra.mxu0 0.0
      %515 = vmatprep.subr.mxu0 0.0
      %516 = vmatpush2.msra.mxu0 0.0
      %517 = vmatprep.subr.mxu0 0.0
      %518 = vmatpush2.msra.mxu0 0.0
      %519 = vmatprep.subr.mxu0 0.0
      %520 = vmatpush2.msra.mxu0 0.0
      %521 = vmatprep.subr.mxu0 0.0
      %522 = vmatpush2.msra.mxu0 0.0
      %523 = vmatprep.subr.mxu0 0.0
      %524 = vmatpush2.msra.mxu0 0.0
      %525 = vmatprep.subr.mxu0 0.0
      %526 = vmatpush2.msra.mxu0 0.0
      %527 = vmatprep.subr.mxu0 0.0
      %528 = vmatpush2.msra.mxu0 0.0
      %529 = vmatprep.subr.mxu0 0.0
      %530 = vmatpush2.msra.mxu0 0.0
      %531 = vmatprep.subr.mxu0 0.0
      %532 = vmatpush2.msra.mxu0 0.0
      %533 = vmatprep.subr.mxu0 0.0
      %534 = vmatpush2.msra.mxu0 0.0
      %535 = vmatprep.subr.mxu0 0.0
      %536 = vmatpush2.msra.mxu0 0.0
      %537 = vmatprep.mubr.f32.mxu0 0.0
      %538 = vmatmul.mubr.f32.gmra.mxu0 %v467
      %v539 = vpop.f32.mrf.mxu0
      %v540 = vadd.f32 0.0, %v539
      %v541 = vpop.f32.mrf.mxu0
      %v542 = vadd.f32 0.0, %v541
      %543 = vdwg.mxu0
      %v546 = vcombine.low %v540, %v542
      %548 = vst [vmem:[%s224] sm:$0xff] %v546
      %p549 = scmp.lt.s32.totalorder %s16, 1
      %s550 = scalar_select %p549, %s16, 1
      %s551 = smul.addr %s550, 2
      %s552 = smul.addr %s551, 4
      %s553 = scalar_lea.vmem %s5, %s552
      // Predicated region
      $region41: #{dense_block_forward.5} parent=39 // pred_check
        %p554 = pneg %p144
      $region42: #{dense_block_forward.5} parent=39 // pred_check_branch
        %556 = sbr.rel (%p554) target = $region44
      $region43: #{dense_block_forward.5} parent=39 // pred_region
        _
      $region44: #{dense_block_forward.5} parent=39 // pred_fallthru
        _
    $region40: #{dense_block_forward.5} parent=5 // pred_fallthru
      _
    %p557 = scmp.le.s32.totalorder 2, %s11
    // Predicated region
    $region45: #{dense_block_forward.5} parent=5 // pred_check
      %p558 = pneg %p557
    $region46: #{dense_block_forward.5} parent=5 // pred_check_branch
      %560 = sbr.rel (%p558) target = $region48
    $region47: #{dense_block_forward.5} parent=5 // pred_region
      %s561 = ssub.s32 %s11, 2
      // Predicated region
      $region49: #{dense_block_forward.5} parent=47 // pred_check
        %p562 = pneg %p150
      $region50: #{dense_block_forward.5} parent=47 // pred_check_branch
        %564 = sbr.rel (%p562) target = $region52
      $region51: #{dense_block_forward.5} parent=47 // pred_region
        %p565 = scmp.lt.s32.totalorder %s17, 1
        %s566 = scalar_select %p565, %s17, 1
        %s567 = smul.addr %s566, 2
        %s568 = smul.addr %s567, 4
        %s569 = scalar_lea.vmem %s5, %s568
      $region52: #{dense_block_forward.5} parent=47 // pred_fallthru
        _
    $region48: #{dense_block_forward.5} parent=5 // pred_fallthru
      _
  $region6: #{dense_block_forward.5} parent=0 // loop_footer
    %s15 = sadd.s32 1, %s11
  $region7: #{dense_block_forward.5} parent=0 // loop_footer_branch
    %10 = sbr.rel target = $region3
  $region8: #{dense_block_forward.5} parent=0 // loop_exit
    _

// kernel: dense_block_forward.7
$region0: #{dense_block_forward.7}
  #allocation0 [shape = 'u32[]', space=smem, size = 0x4, offset = 0x4, fixed_abs, tag = 'smem constant byte address 0x4 - core index']
  #allocation1 [shape = 'u32[144,128]{1,0:T(1,128)}', space=vmem, size = 0x12000, scoped, tag = 'internal scratch']
  %s0 = inlined_call_operand.vmem [shape: f32[2,12,256], index: 0, kind: input, shape index: {}]
  %s1 = inlined_call_operand.vmem [shape: f32[8,1], index: 1, kind: input, shape index: {}]
  %s2 = inlined_call_operand.vmem [shape: f32[8,1], index: 2, kind: input, shape index: {}]
  %s3 = inlined_call_operand.vmem [shape: f32[2,256], index: 3, kind: input, shape index: {}]
  %s4 = inlined_call_operand.vmem [shape: f32[4,72], index: 4, kind: input, shape index: {}]
  %s5 = inlined_call_operand.vmem [shape: f32[2,4,256], index: 5, kind: output, shape index: {}]
  %s6 = sld [smem:[#allocation0]]
  $region53: #{dense_block_forward.7} parent=0
    _
  %s8 = ssub.s32 1, %s6
  %s9 = scalar_select 0, %s8, %s6
  loop: start=0, step=1, limit=4
  $region2: #{dense_block_forward.7} parent=0 // loop_pre_header
    _
  $region3: #{dense_block_forward.7} parent=0 // loop_header
    %s11 = sphi 0, %s15
    %p12 = scmp.ge.s32.totalorder %s11, 4
    %s21 = sphi 0, %s23
    %s24 = sphi 0, %s21
    %s25 = sphi 0, %s24
    %s41 = sphi 0, %s25
    %s45 = sphi 0, %s45
    %s47 = sphi 0, %s45
    %s48 = sphi 0, %s47
    %s62 = sphi 0, %s48
    %s66 = sphi 0, %s66
    %s68 = sphi 0, %s66
    %s69 = sphi 0, %s68
    %s83 = sphi 0, %s69
    %s87 = sphi 0, %s87
    %s89 = sphi 0, %s87
    %s90 = sphi 0, %s89
    %s104 = sphi 0, %s90
    %s108 = sphi 0, %s108
    %s110 = sphi 0, %s108
    %s111 = sphi 0, %s110
    %s125 = sphi 0, %s111
    %s131 = sphi 0, %s133
    %s134 = sphi 0, %s131
    %s135 = sphi 0, %s134
    %s151 = sphi 0, %s135
  $region4: #{dense_block_forward.7} parent=0 // loop_header_branch
    %14 = sbr.rel (%p12) target = $region8
  $region5: #{dense_block_forward.7} parent=0 // loop_body
    %s16 = ssub.s32 %s11, 1
    %s17 = ssub.s32 %s11, 2
    %s18 = sadd.s32 %s11, 1
    %s19 = ssub.s32 %s11, %s18
    %p20 = scmp.eq.s32.totalorder %s19, 0
    %s22 = sadd.s32 %s21, 1
    %s23 = scalar_select %p20, %s21, %s22
    %p26 = pneg %p20
    %p27 = scmp.eq.s32.totalorder %s11, 1
    %p28 = por %p26, %p27
    %p29 = scmp.ne.s32.totalorder %s21, %s24
    %p30 = scmp.eq.s32.totalorder %s11, 0
    %p31 = por %p29, %p30
    %p32 = scmp.ne.s32.totalorder %s21, %s24
    %p33 = scmp.eq.s32.totalorder %s16, 1
    %p34 = por %p32, %p33
    %p35 = scmp.ne.s32.totalorder %s24, %s25
    %p36 = scmp.eq.s32.totalorder %s16, 0
    %p37 = por %p35, %p36
    %p38 = scmp.ne.s32.totalorder %s24, %s25
    %p39 = scmp.eq.s32.totalorder %s17, 1
    %p40 = por %p38, %p39
    %p42 = scmp.ne.s32.totalorder %s25, %s41
    %p43 = scmp.eq.s32.totalorder %s17, 0
    %p44 = por %p42, %p43
    %s46 = sadd.s32 %s45, 1
    %p49 = scmp.eq.s32.totalorder %s11, 1
    %p50 = scmp.ne.s32.totalorder %s45, %s47
    %p51 = scmp.eq.s32.totalorder %s11, 0
    %p52 = por %p50, %p51
    %p53 = scmp.ne.s32.totalorder %s45, %s47
    %p54 = scmp.eq.s32.totalorder %s16, 1
    %p55 = por %p53, %p54
    %p56 = scmp.ne.s32.totalorder %s47, %s48
    %p57 = scmp.eq.s32.totalorder %s16, 0
    %p58 = por %p56, %p57
    %p59 = scmp.ne.s32.totalorder %s47, %s48
    %p60 = scmp.eq.s32.totalorder %s17, 1
    %p61 = por %p59, %p60
    %p63 = scmp.ne.s32.totalorder %s48, %s62
    %p64 = scmp.eq.s32.totalorder %s17, 0
    %p65 = por %p63, %p64
    %s67 = sadd.s32 %s66, 1
    %p70 = scmp.eq.s32.totalorder %s11, 1
    %p71 = scmp.ne.s32.totalorder %s66, %s68
    %p72 = scmp.eq.s32.totalorder %s11, 0
    %p73 = por %p71, %p72
    %p74 = scmp.ne.s32.totalorder %s66, %s68
    %p75 = scmp.eq.s32.totalorder %s16, 1
    %p76 = por %p74, %p75
    %p77 = scmp.ne.s32.totalorder %s68, %s69
    %p78 = scmp.eq.s32.totalorder %s16, 0
    %p79 = por %p77, %p78
    %p80 = scmp.ne.s32.totalorder %s68, %s69
    %p81 = scmp.eq.s32.totalorder %s17, 1
    %p82 = por %p80, %p81
    %p84 = scmp.ne.s32.totalorder %s69, %s83
    %p85 = scmp.eq.s32.totalorder %s17, 0
    %p86 = por %p84, %p85
    %s88 = sadd.s32 %s87, 1
    %p91 = scmp.eq.s32.totalorder %s11, 1
    %p92 = scmp.ne.s32.totalorder %s87, %s89
    %p93 = scmp.eq.s32.totalorder %s11, 0
    %p94 = por %p92, %p93
    %p95 = scmp.ne.s32.totalorder %s87, %s89
    %p96 = scmp.eq.s32.totalorder %s16, 1
    %p97 = por %p95, %p96
    %p98 = scmp.ne.s32.totalorder %s89, %s90
    %p99 = scmp.eq.s32.totalorder %s16, 0
    %p100 = por %p98, %p99
    %p101 = scmp.ne.s32.totalorder %s89, %s90
    %p102 = scmp.eq.s32.totalorder %s17, 1
    %p103 = por %p101, %p102
    %p105 = scmp.ne.s32.totalorder %s90, %s104
    %p106 = scmp.eq.s32.totalorder %s17, 0
    %p107 = por %p105, %p106
    %s109 = sadd.s32 %s108, 1
    %p112 = scmp.eq.s32.totalorder %s11, 1
    %p113 = scmp.ne.s32.totalorder %s108, %s110
    %p114 = scmp.eq.s32.totalorder %s11, 0
    %p115 = por %p113, %p114
    %p116 = scmp.ne.s32.totalorder %s108, %s110
    %p117 = scmp.eq.s32.totalorder %s16, 1
    %p118 = por %p116, %p117
    %p119 = scmp.ne.s32.totalorder %s110, %s111
    %p120 = scmp.eq.s32.totalorder %s16, 0
    %p121 = por %p119, %p120
    %p122 = scmp.ne.s32.totalorder %s110, %s111
    %p123 = scmp.eq.s32.totalorder %s17, 1
    %p124 = por %p122, %p123
    %p126 = scmp.ne.s32.totalorder %s111, %s125
    %p127 = scmp.eq.s32.totalorder %s17, 0
    %p128 = por %p126, %p127
    %s129 = ssub.s32 %s11, %s18
    %p130 = scmp.eq.s32.totalorder %s129, 0
    %s132 = sadd.s32 %s131, 1
    %s133 = scalar_select %p130, %s131, %s132
    %p136 = pneg %p130
    %p137 = scmp.eq.s32.totalorder %s11, 1
    %p138 = por %p136, %p137
    %p139 = scmp.ne.s32.totalorder %s131, %s134
    %p140 = scmp.eq.s32.totalorder %s11, 0
    %p141 = por %p139, %p140
    %p142 = scmp.ne.s32.totalorder %s131, %s134
    %p143 = scmp.eq.s32.totalorder %s16, 1
    %p144 = por %p142, %p143
    %p145 = scmp.ne.s32.totalorder %s134, %s135
    %p146 = scmp.eq.s32.totalorder %s16, 0
    %p147 = por %p145, %p146
    %p148 = scmp.ne.s32.totalorder %s134, %s135
    %p149 = scmp.eq.s32.totalorder %s17, 1
    %p150 = por %p148, %p149
    %p152 = scmp.ne.s32.totalorder %s135, %s151
    %p153 = scmp.eq.s32.totalorder %s17, 0
    %p154 = por %p152, %p153
    %p155 = scmp.le.s32.totalorder 1, %s11
    %p156 = scmp.lt.s32.totalorder %s11, 3
    %p157 = pnand %p155, %p156
    %p158 = pneg %p157
    // Predicated region
    $region9: #{dense_block_forward.7} parent=5 // pred_check
      _
    $region10: #{dense_block_forward.7} parent=5 // pred_check_branch
      %160 = sbr.rel (%p157) target = $region12
    $region11: #{dense_block_forward.7} parent=5 // pred_region
      %s161 = ssub.s32 %s11, 1
      // Predicated region
      $region13: #{dense_block_forward.7} parent=11 // pred_check
        %p162 = pneg %p58
      $region14: #{dense_block_forward.7} parent=11 // pred_check_branch
        %164 = sbr.rel (%p162) target = $region16
      $region15: #{dense_block_forward.7} parent=11 // pred_region
        _
      $region16: #{dense_block_forward.7} parent=11 // pred_fallthru
        _
      // Predicated region
      $region17: #{dense_block_forward.7} parent=11 // pred_check
        %p165 = pneg %p79
      $region18: #{dense_block_forward.7} parent=11 // pred_check_branch
        %167 = sbr.rel (%p165) target = $region20
      $region19: #{dense_block_forward.7} parent=11 // pred_region
        _
      $region20: #{dense_block_forward.7} parent=11 // pred_fallthru
        _
      // Predicated region
      $region21: #{dense_block_forward.7} parent=11 // pred_check
        %p168 = pneg %p100
      $region22: #{dense_block_forward.7} parent=11 // pred_check_branch
        %170 = sbr.rel (%p168) target = $region24
      $region23: #{dense_block_forward.7} parent=11 // pred_region
        _
      $region24: #{dense_block_forward.7} parent=11 // pred_fallthru
        _
      // Predicated region
      $region25: #{dense_block_forward.7} parent=11 // pred_check
        %p171 = pneg %p121
      $region26: #{dense_block_forward.7} parent=11 // pred_check_branch
        %173 = sbr.rel (%p171) target = $region28
      $region27: #{dense_block_forward.7} parent=11 // pred_region
        _
      $region28: #{dense_block_forward.7} parent=11 // pred_fallthru
        _
    $region12: #{dense_block_forward.7} parent=5 // pred_fallthru
      _
    %p174 = scmp.lt.s32.totalorder %s11, 2
    // Predicated region
    $region29: #{dense_block_forward.7} parent=5 // pred_check
      %p175 = pneg %p174
    $region30: #{dense_block_forward.7} parent=5 // pred_check_branch
      %177 = sbr.rel (%p175) target = $region32
    $region31: #{dense_block_forward.7} parent=5 // pred_region
      // Predicated region
      $region33: #{dense_block_forward.7} parent=31 // pred_check
        %p178 = pneg %p31
      $region34: #{dense_block_forward.7} parent=31 // pred_check_branch
        %180 = sbr.rel (%p178) target = $region36
      $region35: #{dense_block_forward.7} parent=31 // pred_region
        %p181 = scmp.lt.s32.totalorder %s11, 1
        %s182 = scalar_select %p181, %s11, 1
        %s183 = smul.addr %s182, 4
        %s184 = smul.addr %s183, 8
        %s185 = scalar_lea.vmem %s0, %s184
      $region36: #{dense_block_forward.7} parent=31 // pred_fallthru
        _
    $region32: #{dense_block_forward.7} parent=5 // pred_fallthru
      _
    %p186 = scmp.le.s32.totalorder 1, %s11
    %p187 = scmp.lt.s32.totalorder %s11, 3
    %p188 = pnand %p186, %p187
    %p189 = pneg %p188
    // Predicated region
    $region37: #{dense_block_forward.7} parent=5 // pred_check
      _
    $region38: #{dense_block_forward.7} parent=5 // pred_check_branch
      %191 = sbr.rel (%p188) target = $region40
    $region39: #{dense_block_forward.7} parent=5 // pred_region
      %s192 = ssub.s32 %s11, 1
      %p193 = scmp.lt.s32.totalorder %s16, 1
      %s194 = scalar_select %p193, %s16, 1
      %s195 = smul.addr %s194, 4
      %s196 = smul.addr %s195, 8
      %s197 = scalar_lea.vmem %s0, %s196
      %p198 = pneg %p37
      %p199 = pneg %p34
      %p200 = pneg %p58
      %p201 = pneg %p55
      %p202 = pneg %p79
      %p203 = pneg %p76
      %p204 = pneg %p100
      %p205 = pneg %p97
      %p206 = pneg %p121
      %p207 = pneg %p118
      %p208 = pneg %p147
      %p209 = pneg %p144
      %p210 = scmp.lt.s32.totalorder %s16, 1
      %s211 = scalar_select %p210, %s16, 1
      %s212 = smul.addr %s211, 2
      %s213 = smul.addr %s212, 4
      %s214 = scalar_lea.vmem %s5, %s213
      %p215 = scmp.lt.s32.totalorder %s16, 1
      %s216 = scalar_select %p215, %s16, 1
      %s217 = smul.addr %s216, 4
      %s218 = smul.addr %s217, 8
      %s219 = scalar_lea.vmem %s0, %s218
      %p220 = scmp.lt.s32.totalorder %s16, 1
      %s221 = scalar_select %p220, %s16, 1
      %s222 = smul.addr %s221, 2
      %s223 = smul.addr %s222, 4
      %s224 = scalar_lea.vmem %s5, %s223
      %v225 = vld [vmem:[%s219] sm:$0xff]
      %v226 = vld [vmem:[%s219 + $0x8] sm:$0xff]
      %v227 = vld [vmem:[%s1] sm:$0xff]
      %229 = vset.pattern.permute.xlu0 0
      %230 = vperm.xlu0 %229, %v227
      %v231 = vpop.permute.xlu0 %230
      %v233 = vmul.f32 %v225, %v231
      %v234 = vmul.f32 %v226, %v231
      %v235 = vld [vmem:[%s2] sm:$0xff]
      %237 = vset.pattern.permute.xlu0 0
      %238 = vperm.xlu0 %237, %v235
      %v239 = vpop.permute.xlu0 %238
      %v241 = vadd.f32 %v233, %v239
      %v242 = vadd.f32 %v234, %v239
      %v243 = vmax.f32 %v241, 0.0
      %v244 = vmax.f32 %v242, 0.0
      %247 = vrot.lane.b32.xlu0 %v243, 17
      %v248 = vpop.permute.xlu0 %247
      %249 = vrot.lane.b32.xlu0 %v244, 17
      %v250 = vpop.permute.xlu0 %249
      %vm251 = vcmask 138240
      %v252 = vsel %vm251, %v248, %v250
      %v256 = vsel %vm251, 0.0, %v248
      %v257 = vsel %vm251, %v250, 0.0
      %v258 = vld [vmem:[%s3] ss:$2 sm:$0x3]
      %s259 = scalar_lea.vmem %s3, 1
      %v260 = vld [vmem:[%s259] ss:$2 sm:$0x3]
      %v262 = vlaneseq
      %v263 = vshrl.u32 %v262, 7
      %v264 = vsub.s32 0, %v263
      %v265 = vrot.slane %v258, %v264
      %v266 = vlaneseq
      %v267 = vshrl.u32 %v266, 7
      %v268 = vsub.s32 1, %v267
      %v269 = vrot.slane %v258, %v268
      %v272 = vmul.f32 %v256, %v265
      %v273 = vmul.f32 %v252, %v269
      %v275 = vlaneseq
      %v276 = vshrl.u32 %v275, 7
      %v277 = vsub.s32 0, %v276
      %v278 = vrot.slane %v260, %v277
      %v279 = vlaneseq
      %v280 = vshrl.u32 %v279, 7
      %v281 = vsub.s32 1, %v280
      %v282 = vrot.slane %v260, %v281
      %283 = vrot.lane.b32.xlu0 %v278, 2
      %v284 = vpop.permute.xlu0 %283
      %285 = vrot.lane.b32.xlu0 %v282, 2
      %v286 = vpop.permute.xlu0 %285
      %vm287 = vcmask 15360
      %v288 = vsel %vm287, %v284, %v286
      %v292 = vmul.f32 %v256, %v284
      %v293 = vmul.f32 %v252, %v288
      %v294 = vmul.f32 %v257, %v286
      %295 = vrot.lane.b32.xlu0 %v265, 16
      %v296 = vpop.permute.xlu0 %295
      %297 = vrot.lane.b32.xlu0 %v269, 16
      %v298 = vpop.permute.xlu0 %297
      %vm299 = vcmask 130048
      %v300 = vsel %vm299, %v296, %v298
      %v304 = vmul.f32 %v256, %v296
      %v305 = vmul.f32 %v252, %v300
      %v306 = vmul.f32 %v257, %v298
      %307 = vrot.lane.b32.xlu0 %v278, 18
      %v308 = vpop.permute.xlu0 %307
      %309 = vrot.lane.b32.xlu0 %v282, 18
      %v310 = vpop.permute.xlu0 %309
      %vm311 = vcmask 146432
      %v312 = vsel %vm311, %v308, %v310
      %v316 = vmul.f32 %v256, %v308
      %v317 = vmul.f32 %v252, %v312
      %v318 = vmul.f32 %v257, %v310
      %319 = vrot.lane.b32.xlu0 %v265, 32
      %v320 = vpop.permute.xlu0 %319
      %321 = vrot.lane.b32.xlu0 %v269, 32
      %v322 = vpop.permute.xlu0 %321
      %vm323 = vcmask 261120
      %v324 = vsel %vm323, %v320, %v322
      %v328 = vmul.f32 %v256, %v320
      %v329 = vmul.f32 %v252, %v324
      %v330 = vmul.f32 %v257, %v322
      %331 = vrot.lane.b32.xlu0 %v278, 34
      %v332 = vpop.permute.xlu0 %331
      %333 = vrot.lane.b32.xlu0 %v282, 34
      %v334 = vpop.permute.xlu0 %333
      %vm335 = vcmask 277504
      %v336 = vsel %vm335, %v332, %v334
      %v340 = vmul.f32 %v256, %v332
      %v341 = vmul.f32 %v252, %v336
      %v342 = vmul.f32 %v257, %v334
      %345 = vrot.lane.b32.xlu0 %v256, 127
      %v346 = vpop.permute.xlu0 %345
      %347 = vrot.lane.b32.xlu0 %v252, 127
      %v348 = vpop.permute.xlu0 %347
      %349 = vrot.lane.b32.xlu0 %v257, 127
      %v350 = vpop.permute.xlu0 %349
      %vm351 = vcmask 1039360
      %v352 = vsel %vm351, %v346, %v348
      %v353 = vsel %vm351, %v348, %v350
      %359 = vrot.lane.b32.xlu0 %v292, 126
      %v360 = vpop.permute.xlu0 %359
      %361 = vrot.lane.b32.xlu0 %v293, 126
      %v362 = vpop.permute.xlu0 %361
      %363 = vrot.lane.b32.xlu0 %v294, 126
      %v364 = vpop.permute.xlu0 %363
      %vm365 = vcmask 1031168
      %v366 = vsel %vm365, %v360, %v362
      %v367 = vsel %vm365, %v362, %v364
      %373 = vrot.lane.b32.xlu0 %v304, 112
      %v374 = vpop.permute.xlu0 %373
      %375 = vrot.lane.b32.xlu0 %v305, 112
      %v376 = vpop.permute.xlu0 %375
      %377 = vrot.lane.b32.xlu0 %v306, 112
      %v378 = vpop.permute.xlu0 %377
      %vm379 = vcmask 916480
      %v380 = vsel %vm379, %v374, %v376
      %v381 = vsel %vm379, %v376, %v378
      %384 = vrot.lane.b32.xlu0 %v256, 111
      %v385 = vpop.permute.xlu0 %384
      %386 = vrot.lane.b32.xlu0 %v252, 111
      %v387 = vpop.permute.xlu0 %386
      %388 = vrot.lane.b32.xlu0 %v257, 111
      %v389 = vpop.permute.xlu0 %388
      %vm390 = vcmask 908288
      %v391 = vsel %vm390, %v385, %v387
      %v392 = vsel %vm390, %v387, %v389
      %398 = vrot.lane.b32.xlu0 %v316, 110
      %v399 = vpop.permute.xlu0 %398
      %400 = vrot.lane.b32.xlu0 %v317, 110
      %v401 = vpop.permute.xlu0 %400
      %402 = vrot.lane.b32.xlu0 %v318, 110
      %v403 = vpop.permute.xlu0 %402
      %vm404 = vcmask 900096
      %v405 = vsel %vm404, %v399, %v401
      %v406 = vsel %vm404, %v401, %v403
      %412 = vrot.lane.b32.xlu0 %v328, 96
      %v413 = vpop.permute.xlu0 %412
      %414 = vrot.lane.b32.xlu0 %v329, 96
      %v415 = vpop.permute.xlu0 %414
      %416 = vrot.lane.b32.xlu0 %v330, 96
      %v417 = vpop.permute.xlu0 %416
      %vm418 = vcmask 785408
      %v419 = vsel %vm418, %v413, %v415
      %v420 = vsel %vm418, %v415, %v417
      %423 = vrot.lane.b32.xlu0 %v256, 95
      %v424 = vpop.permute.xlu0 %423
      %425 = vrot.lane.b32.xlu0 %v252, 95
      %v426 = vpop.permute.xlu0 %425
      %427 = vrot.lane.b32.xlu0 %v257, 95
      %v428 = vpop.permute.xlu0 %427
      %vm429 = vcmask 777216
      %v430 = vsel %vm429, %v424, %v426
      %v431 = vsel %vm429, %v426, %v428
      %437 = vrot.lane.b32.xlu0 %v340, 94
      %v438 = vpop.permute.xlu0 %437
      %439 = vrot.lane.b32.xlu0 %v341, 94
      %v440 = vpop.permute.xlu0 %439
      %441 = vrot.lane.b32.xlu0 %v342, 94
      %v442 = vpop.permute.xlu0 %441
      %vm443 = vcmask 769024
      %v444 = vsel %vm443, %v438, %v440
      %v445 = vsel %vm443, %v440, %v442
      %v448 = vld [vmem:[%s4] sm:$0xf]
      %vm449 = vcmask 588800
      %v451 = vsel %vm449, %v448, 0
      %453 = vmatprep.subr.mxu0 0.0
      %454 = vmatpush1.msra.mxu0 0.0
      %455 = vmatprep.subr.mxu0 0.0
      %456 = vmatpush1.msra.mxu0 0.0
      %457 = vmatprep.subr.mxu0 0.0
      %458 = vmatpush1.msra.mxu0 0.0
      %459 = vmatprep.subr.mxu0 0.0
      %460 = vmatpush1.msra.mxu0 0.0
      %461 = vmatprep.subr.mxu0 0.0
      %462 = vmatpush1.msra.mxu0 0.0
      %463 = vmatprep.subr.mxu0 0.0
      %464 = vmatpush1.msra.mxu0 0.0
      %465 = vmatprep.subr.mxu0 0.0
      %466 = vmatpush1.msra.mxu0 0.0
      %467 = vmatprep.subr.mxu0 %v445
      %468 = vmatpush1.msra.mxu0 %v444
      %469 = vmatprep.subr.mxu0 %v431
      %470 = vmatpush1.msra.mxu0 %v430
      %471 = vmatprep.subr.mxu0 %v420
      %472 = vmatpush1.msra.mxu0 %v419
      %473 = vmatprep.subr.mxu0 %v406
      %474 = vmatpush1.msra.mxu0 %v405
      %475 = vmatprep.subr.mxu0 %v392
      %476 = vmatpush1.msra.mxu0 %v391
      %477 = vmatprep.subr.mxu0 %v381
      %478 = vmatpush1.msra.mxu0 %v380
      %479 = vmatprep.subr.mxu0 %v367
      %480 = vmatpush1.msra.mxu0 %v366
      %481 = vmatprep.subr.mxu0 %v353
      %482 = vmatpush1.msra.mxu0 %v352
      %483 = vmatprep.subr.mxu0 %v273
      %484 = vmatpush1.msra.mxu0 %v272
      %485 = vmatprep.subr.mxu0 0.0
      %486 = vmatpush2.msra.mxu0 0.0
      %487 = vmatprep.subr.mxu0 0.0
      %488 = vmatpush2.msra.mxu0 0.0
      %489 = vmatprep.subr.mxu0 0.0
      %490 = vmatpush2.msra.mxu0 0.0
      %491 = vmatprep.subr.mxu0 0.0
      %492 = vmatpush2.msra.mxu0 0.0
      %493 = vmatprep.subr.mxu0 0.0
      %494 = vmatpush2.msra.mxu0 0.0
      %495 = vmatprep.subr.mxu0 0.0
      %496 = vmatpush2.msra.mxu0 0.0
      %497 = vmatprep.subr.mxu0 0.0
      %498 = vmatpush2.msra.mxu0 0.0
      %499 = vmatprep.subr.mxu0 0.0
      %500 = vmatpush2.msra.mxu0 0.0
      %501 = vmatprep.subr.mxu0 0.0
      %502 = vmatpush2.msra.mxu0 0.0
      %503 = vmatprep.subr.mxu0 0.0
      %504 = vmatpush2.msra.mxu0 0.0
      %505 = vmatprep.subr.mxu0 0.0
      %506 = vmatpush2.msra.mxu0 0.0
      %507 = vmatprep.subr.mxu0 0.0
      %508 = vmatpush2.msra.mxu0 0.0
      %509 = vmatprep.subr.mxu0 0.0
      %510 = vmatpush2.msra.mxu0 0.0
      %511 = vmatprep.subr.mxu0 0.0
      %512 = vmatpush2.msra.mxu0 0.0
      %513 = vmatprep.subr.mxu0 0.0
      %514 = vmatpush2.msra.mxu0 0.0
      %515 = vmatprep.subr.mxu0 0.0
      %516 = vmatpush2.msra.mxu0 0.0
      %517 = vmatprep.mubr.f32.mxu0 0.0
      %518 = vmatmul.mubr.f32.gmra.mxu0 %v451
      %v519 = vpop.f32.mrf.mxu0
      %v520 = vadd.f32 0.0, %v519
      %v521 = vpop.f32.mrf.mxu0
      %v522 = vadd.f32 0.0, %v521
      %523 = vdwg.mxu0
      %v526 = vcombine.low %v520, %v522
      %528 = vst [vmem:[%s224] sm:$0xff] %v526
      %p529 = scmp.lt.s32.totalorder %s16, 1
      %s530 = scalar_select %p529, %s16, 1
      %s531 = smul.addr %s530, 2
      %s532 = smul.addr %s531, 4
      %s533 = scalar_lea.vmem %s5, %s532
      // Predicated region
      $region41: #{dense_block_forward.7} parent=39 // pred_check
        %p534 = pneg %p144
      $region42: #{dense_block_forward.7} parent=39 // pred_check_branch
        %536 = sbr.rel (%p534) target = $region44
      $region43: #{dense_block_forward.7} parent=39 // pred_region
        _
      $region44: #{dense_block_forward.7} parent=39 // pred_fallthru
        _
    $region40: #{dense_block_forward.7} parent=5 // pred_fallthru
      _
    %p537 = scmp.le.s32.totalorder 2, %s11
    // Predicated region
    $region45: #{dense_block_forward.7} parent=5 // pred_check
      %p538 = pneg %p537
    $region46: #{dense_block_forward.7} parent=5 // pred_check_branch
      %540 = sbr.rel (%p538) target = $region48
    $region47: #{dense_block_forward.7} parent=5 // pred_region
      %s541 = ssub.s32 %s11, 2
      // Predicated region
      $region49: #{dense_block_forward.7} parent=47 // pred_check
        %p542 = pneg %p150
      $region50: #{dense_block_forward.7} parent=47 // pred_check_branch
        %544 = sbr.rel (%p542) target = $region52
      $region51: #{dense_block_forward.7} parent=47 // pred_region
        %p545 = scmp.lt.s32.totalorder %s17, 1
        %s546 = scalar_select %p545, %s17, 1
        %s547 = smul.addr %s546, 2
        %s548 = smul.addr %s547, 4
        %s549 = scalar_lea.vmem %s5, %s548
      $region52: #{dense_block_forward.7} parent=47 // pred_fallthru
        _
    $region48: #{dense_block_forward.7} parent=5 // pred_fallthru
      _
  $region6: #{dense_block_forward.7} parent=0 // loop_footer
    %s15 = sadd.s32 1, %s11
  $region7: #{dense_block_forward.7} parent=0 // loop_footer_branch
    %10 = sbr.rel target = $region3
  $region8: #{dense_block_forward.7} parent=0 // loop_exit
    _

</llo_original>
